<compile_context>
chip_gen: v7x
topology: tpu7x:2x2x1
jax: 0.10.0
libtpu: 0.0.40
codegen_flags: <defaults>
</compile_context>

<pallas_src>
import functools

import jax
import jax.numpy as jnp
from jax.experimental import pallas as pl
from jax.experimental.pallas import tpu as pltpu

EPS = 1e-5
SLOPE = 0.1  # LeakyReLU negative_slope


def _leaky(x):
    return jnp.where(x >= 0, x, SLOPE * x)


# ----------------------------- fused Pallas kernel -----------------------------

def _make_block_kernel(*, stride, equal_in_out, act_before_res,
                       Cin, Cout, Ho, Wo, Hh, Wh):
    """Builds the fused BasicBlock kernel for one image per grid step."""
    P = stride * stride
    conv1_uses_act = equal_in_out or act_before_res
    shortcut_uses_act = (not equal_in_out) and act_before_res

    def tap(kh, kw):
        # (parity-plane index, in-plane row/col offset) for 3x3 tap (kh, kw)
        # of a stride-`stride` conv with padding=1 on the parity-split input.
        return (kh % stride) * stride + (kw % stride), kh // stride, kw // stride

    # Plane/offset holding original pixels at stride positions (identity / 1x1
    # shortcut): x[s*ho, s*wo] == padded[s*ho + 1, s*wo + 1].
    p_id = (1 % stride) * stride + (1 % stride)
    o_id = 1 // stride

    def kernel(*refs):
        if equal_in_out:
            planes_ref, w1_ref, w2_ref, bn1_ref, shift_ref, o_ref, pad_ref = refs
            ws_ref = None
        else:
            (planes_ref, w1_ref, w2_ref, ws_ref, bn1_ref, shift_ref,
             o_ref, pad_ref) = refs

        # Raw parity planes (bf16).  Pad pixels carry either 0 (raw consumer)
        # or -shift/scale (activated consumer -> bn1+lrelu maps them to ~0).
        raw = [planes_ref[p * Hh:(p + 1) * Hh, :, :] for p in range(P)]

        # bn1 + LeakyReLU (folded scale/shift): f32 math, one bf16 cast per
        # parity plane (not per tap).
        if conv1_uses_act:
            s1 = bn1_ref[0:1, :].reshape(1, 1, Cin)
            b1 = bn1_ref[1:2, :].reshape(1, 1, Cin)
            src = [
                _leaky(raw[p].astype(jnp.float32) * s1 + b1).astype(jnp.bfloat16)
                for p in range(P)
            ]
        else:
            src = raw  # conv1 consumes raw x (equalInOut=False, no pre-act)

        # conv1 (3x3, stride) with bn2's scale pre-folded into the weights.
        # kw taps merged along channels -> 3 matmuls with K = 3*Cin,
        # bf16 operands, f32 accumulation.
        acc1 = jnp.zeros((Ho * Wo, Cout), jnp.float32)
        for kh in range(3):
            parts = []
            for kw in range(3):
                p, ro, co = tap(kh, kw)
                parts.append(src[p][ro:ro + Ho, co:co + Wo, :])
            lhs = jnp.concatenate(parts, axis=-1).reshape(Ho * Wo, 3 * Cin)
            acc1 = acc1 + jnp.dot(lhs, w1_ref[kh],
                                  preferred_element_type=jnp.float32)

        # conv1 bias + bn2 shift (merged), LeakyReLU, single bf16 cast.
        out1 = _leaky(acc1 + shift_ref[0:1, :]).astype(jnp.bfloat16)
        # TODO(synk): dropout (dropRate > 0, training mode) is a no-op here.

        # conv2's zero-padded input lives in a bf16 VMEM scratch.  Only the
        # 1-pixel halo is zeroed each step (interior fully overwritten); this
        # is cheap and correct even if the batch grid is split across cores.
        zrow = jnp.zeros((1, Wo + 2, Cout), jnp.bfloat16)
        zcol = jnp.zeros((Ho + 2, 1, Cout), jnp.bfloat16)
        pad_ref[0:1, :, :] = zrow
        pad_ref[Ho + 1:Ho + 2, :, :] = zrow
        pad_ref[:, 0:1, :] = zcol
        pad_ref[:, Wo + 1:Wo + 2, :] = zcol
        pad_ref[1:Ho + 1, 1:Wo + 1, :] = out1.reshape(Ho, Wo, Cout)

        # conv2 (3x3, stride 1, pad 1): kw-merged -> 3 matmuls with K = 3*Cout.
        acc2 = jnp.zeros((Ho * Wo, Cout), jnp.float32)
        for kh in range(3):
            parts = [pad_ref[kh:kh + Ho, kw:kw + Wo, :] for kw in range(3)]
            lhs = jnp.concatenate(parts, axis=-1).reshape(Ho * Wo, 3 * Cout)
            acc2 = acc2 + jnp.dot(lhs, w2_ref[kh],
                                  preferred_element_type=jnp.float32)

        # Residual branch: identity (equalInOut) or in-kernel 1x1 shortcut.
        if equal_in_out:
            res = raw[p_id][o_id:o_id + Ho, o_id:o_id + Wo, :]
            res = res.reshape(Ho * Wo, Cout).astype(jnp.float32)
        else:
            rsrc = src if shortcut_uses_act else raw
            rlhs = rsrc[p_id][o_id:o_id + Ho, o_id:o_id + Wo, :]
            rlhs = rlhs.reshape(Ho * Wo, Cin)
            res = jnp.dot(rlhs, ws_ref[...], preferred_element_type=jnp.float32)

        # conv2 bias (+ shortcut bias), merged into one shift vector.
        y = acc2 + res + shift_ref[1:2, :]
        o_ref[...] = y.reshape(Ho, Wo, Cout).astype(o_ref.dtype)

    return kernel


# --------------------------------- wrapper ---------------------------------

def _fold_bn(bn):
    scale = bn["gamma"] * jax.lax.rsqrt(bn["var"] + EPS)
    shift = bn["beta"] - bn["mean"] * scale
    return scale, shift


def _derive_vmem_limit(P, Hh, Wh, Cin, Cout, Ho, Wo):
    """Rough per-core VMEM footprint with generous headroom, clamped to
    [32 MiB, 64 MiB] so it is legal on every TPU generation (v7x: 64 MiB)."""
    bf16, f32 = 2, 4
    planes_tile = P * Hh * Wh * Cin * bf16                       # per-step input
    weights = (9 * Cin * Cout + 9 * Cout * Cout + Cin * Cout) * bf16  # 1-buffered
    tables = (2 * Cin + 2 * Cout) * f32
    pad_scratch = (Ho + 2) * (Wo + 2) * Cout * bf16
    out_tile = Ho * Wo * Cout * f32
    # In-kernel temporaries: activated planes (f32 + bf16), merged-K lhs slabs,
    # two f32 accumulators.
    work = (3 * planes_tile + 2 * Ho * Wo * 3 * max(Cin, Cout) * bf16
            + 2 * Ho * Wo * Cout * f32)
    total = 2 * planes_tile + weights + tables + pad_scratch + 2 * out_tile + work
    total = 2 * total + (4 << 20)      # 2x safety for Mosaic-internal scratch
    return int(min(max(total, 32 << 20), 64 << 20))


def basic_block_forward(x_nchw, params, *, stride, equal_in_out,
                        activate_before_residual):
    x = jnp.transpose(x_nchw, (0, 2, 3, 1)).astype(jnp.float32)   # NHWC
    N, H, W, Cin = x.shape
    Cout = params["conv1_w"].shape[-1]
    Ho = (H - 1) // stride + 1
    Wo = (W - 1) // stride + 1
    P = stride * stride
    conv1_uses_act = equal_in_out or activate_before_residual

    # Fold BatchNorm (inference) into scale/shift vectors; fold bn2's scale
    # into conv1's weights (before the bf16 cast); merge all biases into two
    # small shift vectors.  Weights reshaped to (kh, kw*Cin, Cout) to match the
    # in-kernel kw-merged lhs layout.
    s1, b1 = _fold_bn(params["bn1"])
    s2, b2s = _fold_bn(params["bn2"])
    w1f = (params["conv1_w"] * s2).astype(jnp.bfloat16).reshape(3, 3 * Cin, Cout)
    w2f = params["conv2_w"].astype(jnp.bfloat16).reshape(3, 3 * Cout, Cout)
    shift12 = params["conv1_b"] * s2 + b2s                     # after conv1
    final_shift = params["conv2_b"]
    if not equal_in_out:
        final_shift = final_shift + params["short_b"]
    bn1_ss = jnp.stack([s1, b1]).astype(jnp.float32)                # (2, Cin)
    out_ss = jnp.stack([shift12, final_shift]).astype(jnp.float32)  # (2, Cout)

    # Conv padding=1: pad with -b1/s1 per channel when conv1 consumes the
    # bn1-activated tensor (so bn1+LeakyReLU maps pads to ~0), else with 0.
    # Then split into stride x stride parity planes so every 3x3 tap is a
    # unit-stride static slice, and ship in bf16 (halves the largest DMA).
    # This is layout plumbing that XLA fuses with the transpose above.
    Hp = ((H + 2 + stride - 1) // stride) * stride
    Wp = ((W + 2 + stride - 1) // stride) * stride
    Hh, Wh = Hp // stride, Wp // stride
    if conv1_uses_act:
        pad_val = (-b1 / s1).reshape(1, 1, 1, Cin)
    else:
        pad_val = jnp.zeros((1, 1, 1, Cin), jnp.float32)
    xp = jnp.broadcast_to(pad_val, (N, Hp, Wp, Cin))
    xp = jax.lax.dynamic_update_slice(xp, x, (0, 1, 1, 0))
    planes = xp.reshape(N, Hh, stride, Wh, stride, Cin)
    planes = jnp.transpose(planes, (0, 2, 4, 1, 3, 5))
    planes = planes.reshape(N, P * Hh, Wh, Cin).astype(jnp.bfloat16)

    kernel = _make_block_kernel(
        stride=stride, equal_in_out=equal_in_out,
        act_before_res=activate_before_residual,
        Cin=Cin, Cout=Cout, Ho=Ho, Wo=Wo, Hh=Hh, Wh=Wh)

    # Grid-invariant inputs are single-buffered (their index maps are constant
    # over the batch grid, so they are only DMA'd once anyway; Buffered(1)
    # additionally halves their VMEM footprint).
    single = pl.Buffered(1)
    inputs = [planes, w1f, w2f]
    in_specs = [
        pl.BlockSpec((None, P * Hh, Wh, Cin), lambda n: (n, 0, 0, 0)),
        pl.BlockSpec((3, 3 * Cin, Cout), lambda n: (0, 0, 0),
                     pipeline_mode=single),
        pl.BlockSpec((3, 3 * Cout, Cout), lambda n: (0, 0, 0),
                     pipeline_mode=single),
    ]
    if not equal_in_out:
        ws = params["short_w"].reshape(Cin, Cout).astype(jnp.bfloat16)
        inputs.append(ws)
        in_specs.append(pl.BlockSpec((Cin, Cout), lambda n: (0, 0),
                                     pipeline_mode=single))
    inputs += [bn1_ss, out_ss]
    in_specs += [
        pl.BlockSpec((2, Cin), lambda n: (0, 0), pipeline_mode=single),
        pl.BlockSpec((2, Cout), lambda n: (0, 0), pipeline_mode=single),
    ]

    y = pl.pallas_call(
        kernel,
        grid=(N,),
        in_specs=in_specs,
        out_specs=pl.BlockSpec((None, Ho, Wo, Cout), lambda n: (n, 0, 0, 0)),
        out_shape=jax.ShapeDtypeStruct((N, Ho, Wo, Cout), jnp.float32),
        scratch_shapes=[pltpu.VMEM((Ho + 2, Wo + 2, Cout), jnp.bfloat16)],
        compiler_params=pltpu.CompilerParams(
            dimension_semantics=("parallel",),
            vmem_limit_bytes=_derive_vmem_limit(P, Hh, Wh, Cin, Cout, Ho, Wo),
        ),
    )(*inputs)

    # Keep the PyTorch NCHW interface for this standalone block; when chaining
    # blocks, stay in NHWC and skip this transpose (extra HBM round trip).
    return jnp.transpose(y, (0, 3, 1, 2))


# --------------------------- pure-JAX reference ---------------------------

def _conv_ref(x, w_hwio, b, stride, pad):
    y = jax.lax.conv_general_dilated(
        x, w_hwio, window_strides=(stride, stride), padding=pad,
        dimension_numbers=("NHWC", "HWIO", "NHWC"))
    return y + b[None, None, None, :]


def _bn_act_ref(t, p):
    y = (t - p["mean"]) * jax.lax.rsqrt(p["var"] + EPS) * p["gamma"] + p["beta"]
    return _leaky(y)


def ref_forward(x_nchw, params, *, stride, equal_in_out,
                activate_before_residual):
    x = jnp.transpose(x_nchw, (0, 2, 3, 1)).astype(jnp.float32)
    if (not equal_in_out) and activate_before_residual:
        x = _bn_act_ref(x, params["bn1"])
        out = x
    else:
        out = _bn_act_ref(x, params["bn1"])
    h = out if equal_in_out else x
    h = _conv_ref(h, params["conv1_w"], params["conv1_b"], stride,
                  ((1, 1), (1, 1)))
    h = _bn_act_ref(h, params["bn2"])
    h = _conv_ref(h, params["conv2_w"], params["conv2_b"], 1, ((1, 1), (1, 1)))
    res = x if equal_in_out else _conv_ref(x, params["short_w"],
                                           params["short_b"], stride,
                                           ((0, 0), (0, 0)))
    return jnp.transpose(res + h, (0, 3, 1, 2))


# ------------------------------ param init ------------------------------

def init_params(key, cin, cout):
    ks = jax.random.split(key, 5)

    def bn_params(k, c):
        k1, k2, k3, k4 = jax.random.split(k, 4)
        return {
            "gamma": 1.0 + 0.1 * jax.random.normal(k1, (c,), jnp.float32),
            "beta": 0.1 * jax.random.normal(k2, (c,), jnp.float32),
            "mean": 0.1 * jax.random.normal(k3, (c,), jnp.float32),
            "var": 1.0 + 0.1 * jnp.abs(jax.random.normal(k4, (c,), jnp.float32)),
        }

    def conv_params(k, kh, kw, ci, co):
        k1, k2 = jax.random.split(k)
        fan = kh * kw * ci
        w = jax.random.normal(k1, (kh, kw, ci, co), jnp.float32) / jnp.sqrt(fan)
        b = 0.05 * jax.random.normal(k2, (co,), jnp.float32)
        return w, b

    c1w, c1b = conv_params(ks[0], 3, 3, cin, cout)
    c2w, c2b = conv_params(ks[1], 3, 3, cout, cout)
    sw, sb = conv_params(ks[2], 1, 1, cin, cout)
    return {
        "bn1": bn_params(ks[3], cin),
        "bn2": bn_params(ks[4], cout),
        "conv1_w": c1w, "conv1_b": c1b,
        "conv2_w": c2w, "conv2_b": c2b,
        "short_w": sw, "short_b": sb,
    }


# --------------------------------- main ---------------------------------

if __name__ == "__main__":
    IN_PLANES, OUT_PLANES, STRIDE = 4, 8, 2
    ACT_BEFORE_RES = True
    EQUAL = IN_PLANES == OUT_PLANES

    key = jax.random.PRNGKey(0)
    kx, kp = jax.random.split(key)
    x = jax.random.normal(kx, (2, IN_PLANES, 16, 16), jnp.float32)  # NCHW
    params = init_params(kp, IN_PLANES, OUT_PLANES)

    fwd = jax.jit(functools.partial(
        basic_block_forward, stride=STRIDE, equal_in_out=EQUAL,
        activate_before_residual=ACT_BEFORE_RES))
    ref = jax.jit(functools.partial(
        ref_forward, stride=STRIDE, equal_in_out=EQUAL,
        activate_before_residual=ACT_BEFORE_RES))

    y = jax.block_until_ready(fwd(x, params))
    y_ref = jax.block_until_ready(ref(x, params))

    assert y.shape == (2, OUT_PLANES, 8, 8), y.shape
    err = float(jnp.max(jnp.abs(y - y_ref)))
    # bf16 MXU operands + bf16 input planes vs. an all-f32 reference: expected
    # ~1e-2 quantization error; tolerance well below any structural mistake.
    assert err < 8e-2, f"max abs err {err}"
    print("KERNEL_OK")
</pallas_src>

<mosaic_0001>
module attributes {stable_mosaic.version = 11 : i64} {
  func.func @kernel(%arg0: i32, %arg1: memref<1x36x9x4xbf16, #tpu.memory_space<vmem>>, %arg2: memref<3x12x8xbf16, #tpu.memory_space<vmem>>, %arg3: memref<3x24x8xbf16, #tpu.memory_space<vmem>>, %arg4: memref<4x8xbf16, #tpu.memory_space<vmem>>, %arg5: memref<2x4xf32, #tpu.memory_space<vmem>>, %arg6: memref<2x8xf32, #tpu.memory_space<vmem>>, %arg7: memref<1x8x8x8xf32, #tpu.memory_space<vmem>>, %arg8: memref<10x10x8xbf16, #tpu.memory_space<vmem>>) attributes {dimension_semantics = [#tpu.dimension_semantics<parallel>], iteration_bounds = array<i64: 2>, scalar_prefetch = 0 : i64, scratch_operands = 1 : i64, tpu.core_type = #tpu.core_type<tc>, window_params = [{transform_indices = @transform_0, window_bounds = array<i64: 1, 36, 9, 4>}, {pipeline_mode = #tpu.pipeline_mode<synchronous>, transform_indices = @transform_1, window_bounds = array<i64: 3, 12, 8>}, {pipeline_mode = #tpu.pipeline_mode<synchronous>, transform_indices = @transform_2, window_bounds = array<i64: 3, 24, 8>}, {pipeline_mode = #tpu.pipeline_mode<synchronous>, transform_indices = @transform_3, window_bounds = array<i64: 4, 8>}, {pipeline_mode = #tpu.pipeline_mode<synchronous>, transform_indices = @transform_4, window_bounds = array<i64: 2, 4>}, {pipeline_mode = #tpu.pipeline_mode<synchronous>, transform_indices = @transform_5, window_bounds = array<i64: 2, 8>}, {transform_indices = @transform_6, window_bounds = array<i64: 1, 8, 8, 8>}]} {
    %c0 = arith.constant 0 : index
    %c0_0 = arith.constant 0 : index
    %c0_1 = arith.constant 0 : index
    %c0_2 = arith.constant 0 : index
    %0 = vector.load %arg1[%c0, %c0_0, %c0_1, %c0_2] : memref<1x36x9x4xbf16, #tpu.memory_space<vmem>>, vector<1x9x9x4xbf16>
    %1 = vector.shape_cast %0 : vector<1x9x9x4xbf16> to vector<9x9x4xbf16>
    %c0_3 = arith.constant 0 : index
    %c9 = arith.constant 9 : index
    %c0_4 = arith.constant 0 : index
    %c0_5 = arith.constant 0 : index
    %2 = vector.load %arg1[%c0_3, %c9, %c0_4, %c0_5] : memref<1x36x9x4xbf16, #tpu.memory_space<vmem>>, vector<1x9x9x4xbf16>
    %3 = vector.shape_cast %2 : vector<1x9x9x4xbf16> to vector<9x9x4xbf16>
    %c0_6 = arith.constant 0 : index
    %c18 = arith.constant 18 : index
    %c0_7 = arith.constant 0 : index
    %c0_8 = arith.constant 0 : index
    %4 = vector.load %arg1[%c0_6, %c18, %c0_7, %c0_8] : memref<1x36x9x4xbf16, #tpu.memory_space<vmem>>, vector<1x9x9x4xbf16>
    %5 = vector.shape_cast %4 : vector<1x9x9x4xbf16> to vector<9x9x4xbf16>
    %c0_9 = arith.constant 0 : index
    %c27 = arith.constant 27 : index
    %c0_10 = arith.constant 0 : index
    %c0_11 = arith.constant 0 : index
    %6 = vector.load %arg1[%c0_9, %c27, %c0_10, %c0_11] : memref<1x36x9x4xbf16, #tpu.memory_space<vmem>>, vector<1x9x9x4xbf16>
    %7 = vector.shape_cast %6 : vector<1x9x9x4xbf16> to vector<9x9x4xbf16>
    %c0_12 = arith.constant 0 : index
    %c0_13 = arith.constant 0 : index
    %8 = vector.load %arg5[%c0_12, %c0_13] : memref<2x4xf32, #tpu.memory_space<vmem>>, vector<1x4xf32>
    %9 = vector.shape_cast %8 : vector<1x4xf32> to vector<1x1x4xf32>
    %c1 = arith.constant 1 : index
    %c0_14 = arith.constant 0 : index
    %10 = vector.load %arg5[%c1, %c0_14] : memref<2x4xf32, #tpu.memory_space<vmem>>, vector<1x4xf32>
    %11 = vector.shape_cast %10 : vector<1x4xf32> to vector<1x1x4xf32>
    %12 = arith.extf %1 : vector<9x9x4xbf16> to vector<9x9x4xf32>
    %13 = vector.broadcast %9 : vector<1x1x4xf32> to vector<9x9x4xf32>
    %14 = arith.mulf %12, %13 : vector<9x9x4xf32>
    %15 = vector.broadcast %11 : vector<1x1x4xf32> to vector<9x9x4xf32>
    %16 = arith.addf %14, %15 : vector<9x9x4xf32>
    %cst = arith.constant 0.000000e+00 : f32
    %17 = vector.broadcast %cst : f32 to vector<9x9x4xf32>
    %18 = arith.cmpf oge, %16, %17 : vector<9x9x4xf32>
    %cst_15 = arith.constant 1.000000e-01 : f32
    %19 = vector.broadcast %cst_15 : f32 to vector<9x9x4xf32>
    %20 = arith.mulf %19, %16 : vector<9x9x4xf32>
    %21 = arith.select %18, %16, %20 : vector<9x9x4xi1>, vector<9x9x4xf32>
    %22 = arith.truncf %21 : vector<9x9x4xf32> to vector<9x9x4xbf16>
    %23 = arith.extf %3 : vector<9x9x4xbf16> to vector<9x9x4xf32>
    %24 = vector.broadcast %9 : vector<1x1x4xf32> to vector<9x9x4xf32>
    %25 = arith.mulf %23, %24 : vector<9x9x4xf32>
    %26 = vector.broadcast %11 : vector<1x1x4xf32> to vector<9x9x4xf32>
    %27 = arith.addf %25, %26 : vector<9x9x4xf32>
    %cst_16 = arith.constant 0.000000e+00 : f32
    %28 = vector.broadcast %cst_16 : f32 to vector<9x9x4xf32>
    %29 = arith.cmpf oge, %27, %28 : vector<9x9x4xf32>
    %cst_17 = arith.constant 1.000000e-01 : f32
    %30 = vector.broadcast %cst_17 : f32 to vector<9x9x4xf32>
    %31 = arith.mulf %30, %27 : vector<9x9x4xf32>
    %32 = arith.select %29, %27, %31 : vector<9x9x4xi1>, vector<9x9x4xf32>
    %33 = arith.truncf %32 : vector<9x9x4xf32> to vector<9x9x4xbf16>
    %34 = arith.extf %5 : vector<9x9x4xbf16> to vector<9x9x4xf32>
    %35 = vector.broadcast %9 : vector<1x1x4xf32> to vector<9x9x4xf32>
    %36 = arith.mulf %34, %35 : vector<9x9x4xf32>
    %37 = vector.broadcast %11 : vector<1x1x4xf32> to vector<9x9x4xf32>
    %38 = arith.addf %36, %37 : vector<9x9x4xf32>
    %cst_18 = arith.constant 0.000000e+00 : f32
    %39 = vector.broadcast %cst_18 : f32 to vector<9x9x4xf32>
    %40 = arith.cmpf oge, %38, %39 : vector<9x9x4xf32>
    %cst_19 = arith.constant 1.000000e-01 : f32
    %41 = vector.broadcast %cst_19 : f32 to vector<9x9x4xf32>
    %42 = arith.mulf %41, %38 : vector<9x9x4xf32>
    %43 = arith.select %40, %38, %42 : vector<9x9x4xi1>, vector<9x9x4xf32>
    %44 = arith.truncf %43 : vector<9x9x4xf32> to vector<9x9x4xbf16>
    %45 = arith.extf %7 : vector<9x9x4xbf16> to vector<9x9x4xf32>
    %46 = vector.broadcast %9 : vector<1x1x4xf32> to vector<9x9x4xf32>
    %47 = arith.mulf %45, %46 : vector<9x9x4xf32>
    %48 = vector.broadcast %11 : vector<1x1x4xf32> to vector<9x9x4xf32>
    %49 = arith.addf %47, %48 : vector<9x9x4xf32>
    %cst_20 = arith.constant 0.000000e+00 : f32
    %50 = vector.broadcast %cst_20 : f32 to vector<9x9x4xf32>
    %51 = arith.cmpf oge, %49, %50 : vector<9x9x4xf32>
    %cst_21 = arith.constant 1.000000e-01 : f32
    %52 = vector.broadcast %cst_21 : f32 to vector<9x9x4xf32>
    %53 = arith.mulf %52, %49 : vector<9x9x4xf32>
    %54 = arith.select %51, %49, %53 : vector<9x9x4xi1>, vector<9x9x4xf32>
    %55 = arith.truncf %54 : vector<9x9x4xf32> to vector<9x9x4xbf16>
    %cst_22 = arith.constant 0.000000e+00 : f32
    %56 = vector.broadcast %cst_22 : f32 to vector<64x8xf32>
    %57 = vector.extract_strided_slice %22 {offsets = [0, 0, 0], sizes = [8, 8, 4], strides = [1, 1, 1]} : vector<9x9x4xbf16> to vector<8x8x4xbf16>
    %58 = vector.extract_strided_slice %33 {offsets = [0, 0, 0], sizes = [8, 8, 4], strides = [1, 1, 1]} : vector<9x9x4xbf16> to vector<8x8x4xbf16>
    %59 = vector.extract_strided_slice %22 {offsets = [0, 1, 0], sizes = [8, 8, 4], strides = [1, 1, 1]} : vector<9x9x4xbf16> to vector<8x8x4xbf16>
    %60 = tpu.concatenate %57, %58, %59 in 2 : vector<8x8x4xbf16>, vector<8x8x4xbf16>, vector<8x8x4xbf16> -> vector<8x8x12xbf16>
    %61 = vector.shape_cast %60 : vector<8x8x12xbf16> to vector<64x12xbf16>
    %c0_23 = arith.constant 0 : index
    %c0_24 = arith.constant 0 : index
    %c0_25 = arith.constant 0 : index
    %62 = vector.load %arg2[%c0_23, %c0_24, %c0_25] : memref<3x12x8xbf16, #tpu.memory_space<vmem>>, vector<1x12x8xbf16>
    %63 = vector.shape_cast %62 : vector<1x12x8xbf16> to vector<12x8xbf16>
    %cst_26 = arith.constant dense<0.000000e+00> : vector<64x8xf32>
    %64 = tpu.matmul %61, %63, %cst_26 {dimension_numbers = #tpu.dot_dimension_numbers<[1], [0], [0], [1], [0, 0, 1, 1], [], []>} : vector<64x12xbf16>, vector<12x8xbf16>, vector<64x8xf32> -> vector<64x8xf32>
    %65 = arith.addf %56, %64 : vector<64x8xf32>
    %66 = vector.extract_strided_slice %44 {offsets = [0, 0, 0], sizes = [8, 8, 4], strides = [1, 1, 1]} : vector<9x9x4xbf16> to vector<8x8x4xbf16>
    %67 = vector.extract_strided_slice %55 {offsets = [0, 0, 0], sizes = [8, 8, 4], strides = [1, 1, 1]} : vector<9x9x4xbf16> to vector<8x8x4xbf16>
    %68 = vector.extract_strided_slice %44 {offsets = [0, 1, 0], sizes = [8, 8, 4], strides = [1, 1, 1]} : vector<9x9x4xbf16> to vector<8x8x4xbf16>
    %69 = tpu.concatenate %66, %67, %68 in 2 : vector<8x8x4xbf16>, vector<8x8x4xbf16>, vector<8x8x4xbf16> -> vector<8x8x12xbf16>
    %70 = vector.shape_cast %69 : vector<8x8x12xbf16> to vector<64x12xbf16>
    %c1_27 = arith.constant 1 : index
    %c0_28 = arith.constant 0 : index
    %c0_29 = arith.constant 0 : index
    %71 = vector.load %arg2[%c1_27, %c0_28, %c0_29] : memref<3x12x8xbf16, #tpu.memory_space<vmem>>, vector<1x12x8xbf16>
    %72 = vector.shape_cast %71 : vector<1x12x8xbf16> to vector<12x8xbf16>
    %cst_30 = arith.constant dense<0.000000e+00> : vector<64x8xf32>
    %73 = tpu.matmul %70, %72, %cst_30 {dimension_numbers = #tpu.dot_dimension_numbers<[1], [0], [0], [1], [0, 0, 1, 1], [], []>} : vector<64x12xbf16>, vector<12x8xbf16>, vector<64x8xf32> -> vector<64x8xf32>
    %74 = arith.addf %65, %73 : vector<64x8xf32>
    %75 = vector.extract_strided_slice %22 {offsets = [1, 0, 0], sizes = [8, 8, 4], strides = [1, 1, 1]} : vector<9x9x4xbf16> to vector<8x8x4xbf16>
    %76 = vector.extract_strided_slice %33 {offsets = [1, 0, 0], sizes = [8, 8, 4], strides = [1, 1, 1]} : vector<9x9x4xbf16> to vector<8x8x4xbf16>
    %77 = vector.extract_strided_slice %22 {offsets = [1, 1, 0], sizes = [8, 8, 4], strides = [1, 1, 1]} : vector<9x9x4xbf16> to vector<8x8x4xbf16>
    %78 = tpu.concatenate %75, %76, %77 in 2 : vector<8x8x4xbf16>, vector<8x8x4xbf16>, vector<8x8x4xbf16> -> vector<8x8x12xbf16>
    %79 = vector.shape_cast %78 : vector<8x8x12xbf16> to vector<64x12xbf16>
    %c2 = arith.constant 2 : index
    %c0_31 = arith.constant 0 : index
    %c0_32 = arith.constant 0 : index
    %80 = vector.load %arg2[%c2, %c0_31, %c0_32] : memref<3x12x8xbf16, #tpu.memory_space<vmem>>, vector<1x12x8xbf16>
    %81 = vector.shape_cast %80 : vector<1x12x8xbf16> to vector<12x8xbf16>
    %cst_33 = arith.constant dense<0.000000e+00> : vector<64x8xf32>
    %82 = tpu.matmul %79, %81, %cst_33 {dimension_numbers = #tpu.dot_dimension_numbers<[1], [0], [0], [1], [0, 0, 1, 1], [], []>} : vector<64x12xbf16>, vector<12x8xbf16>, vector<64x8xf32> -> vector<64x8xf32>
    %83 = arith.addf %74, %82 : vector<64x8xf32>
    %c0_34 = arith.constant 0 : index
    %c0_35 = arith.constant 0 : index
    %84 = vector.load %arg6[%c0_34, %c0_35] : memref<2x8xf32, #tpu.memory_space<vmem>>, vector<1x8xf32>
    %85 = vector.broadcast %84 : vector<1x8xf32> to vector<64x8xf32>
    %86 = arith.addf %83, %85 : vector<64x8xf32>
    %cst_36 = arith.constant 0.000000e+00 : f32
    %87 = vector.broadcast %cst_36 : f32 to vector<64x8xf32>
    %88 = arith.cmpf oge, %86, %87 : vector<64x8xf32>
    %cst_37 = arith.constant 1.000000e-01 : f32
    %89 = vector.broadcast %cst_37 : f32 to vector<64x8xf32>
    %90 = arith.mulf %89, %86 : vector<64x8xf32>
    %91 = arith.select %88, %86, %90 : vector<64x8xi1>, vector<64x8xf32>
    %92 = arith.truncf %91 : vector<64x8xf32> to vector<64x8xbf16>
    %cst_38 = arith.constant 0.000000e+00 : bf16
    %93 = vector.broadcast %cst_38 : bf16 to vector<1x10x8xbf16>
    %cst_39 = arith.constant 0.000000e+00 : bf16
    %94 = vector.broadcast %cst_39 : bf16 to vector<10x1x8xbf16>
    %c0_40 = arith.constant 0 : index
    %c0_41 = arith.constant 0 : index
    %c0_42 = arith.constant 0 : index
    %95 = vector.load %arg8[%c0_40, %c0_41, %c0_42] : memref<10x10x8xbf16, #tpu.memory_space<vmem>>, vector<1x10x8xbf16>
    tpu.vector_store %arg8[%c0_40, %c0_41, %c0_42], %93 {strides = array<i32>} : memref<10x10x8xbf16, #tpu.memory_space<vmem>>, vector<1x10x8xbf16>,
    %c9_43 = arith.constant 9 : index
    %c0_44 = arith.constant 0 : index
    %c0_45 = arith.constant 0 : index
    %96 = vector.load %arg8[%c9_43, %c0_44, %c0_45] : memref<10x10x8xbf16, #tpu.memory_space<vmem>>, vector<1x10x8xbf16>
    tpu.vector_store %arg8[%c9_43, %c0_44, %c0_45], %93 {strides = array<i32>} : memref<10x10x8xbf16, #tpu.memory_space<vmem>>, vector<1x10x8xbf16>,
    %c0_46 = arith.constant 0 : index
    %c0_47 = arith.constant 0 : index
    %c0_48 = arith.constant 0 : index
    %97 = vector.load %arg8[%c0_46, %c0_47, %c0_48] : memref<10x10x8xbf16, #tpu.memory_space<vmem>>, vector<10x1x8xbf16>
    tpu.vector_store %arg8[%c0_46, %c0_47, %c0_48], %94 {strides = array<i32>} : memref<10x10x8xbf16, #tpu.memory_space<vmem>>, vector<10x1x8xbf16>,
    %c0_49 = arith.constant 0 : index
    %c9_50 = arith.constant 9 : index
    %c0_51 = arith.constant 0 : index
    %98 = vector.load %arg8[%c0_49, %c9_50, %c0_51] : memref<10x10x8xbf16, #tpu.memory_space<vmem>>, vector<10x1x8xbf16>
    tpu.vector_store %arg8[%c0_49, %c9_50, %c0_51], %94 {strides = array<i32>} : memref<10x10x8xbf16, #tpu.memory_space<vmem>>, vector<10x1x8xbf16>,
    %99 = vector.shape_cast %92 : vector<64x8xbf16> to vector<8x8x8xbf16>
    %c1_52 = arith.constant 1 : index
    %c1_53 = arith.constant 1 : index
    %c0_54 = arith.constant 0 : index
    %100 = vector.load %arg8[%c1_52, %c1_53, %c0_54] : memref<10x10x8xbf16, #tpu.memory_space<vmem>>, vector<8x8x8xbf16>
    tpu.vector_store %arg8[%c1_52, %c1_53, %c0_54], %99 {strides = array<i32>} : memref<10x10x8xbf16, #tpu.memory_space<vmem>>, vector<8x8x8xbf16>,
    %cst_55 = arith.constant 0.000000e+00 : f32
    %101 = vector.broadcast %cst_55 : f32 to vector<64x8xf32>
    %c0_56 = arith.constant 0 : index
    %c0_57 = arith.constant 0 : index
    %c0_58 = arith.constant 0 : index
    %102 = vector.load %arg8[%c0_56, %c0_57, %c0_58] : memref<10x10x8xbf16, #tpu.memory_space<vmem>>, vector<8x8x8xbf16>
    %c0_59 = arith.constant 0 : index
    %c1_60 = arith.constant 1 : index
    %c0_61 = arith.constant 0 : index
    %103 = vector.load %arg8[%c0_59, %c1_60, %c0_61] : memref<10x10x8xbf16, #tpu.memory_space<vmem>>, vector<8x8x8xbf16>
    %c0_62 = arith.constant 0 : index
    %c2_63 = arith.constant 2 : index
    %c0_64 = arith.constant 0 : index
    %104 = vector.load %arg8[%c0_62, %c2_63, %c0_64] : memref<10x10x8xbf16, #tpu.memory_space<vmem>>, vector<8x8x8xbf16>
    %105 = tpu.concatenate %102, %103, %104 in 2 : vector<8x8x8xbf16>, vector<8x8x8xbf16>, vector<8x8x8xbf16> -> vector<8x8x24xbf16>
    %106 = vector.shape_cast %105 : vector<8x8x24xbf16> to vector<64x24xbf16>
    %c0_65 = arith.constant 0 : index
    %c0_66 = arith.constant 0 : index
    %c0_67 = arith.constant 0 : index
    %107 = vector.load %arg3[%c0_65, %c0_66, %c0_67] : memref<3x24x8xbf16, #tpu.memory_space<vmem>>, vector<1x24x8xbf16>
    %108 = vector.shape_cast %107 : vector<1x24x8xbf16> to vector<24x8xbf16>
    %cst_68 = arith.constant dense<0.000000e+00> : vector<64x8xf32>
    %109 = tpu.matmul %106, %108, %cst_68 {dimension_numbers = #tpu.dot_dimension_numbers<[1], [0], [0], [1], [0, 0, 1, 1], [], []>} : vector<64x24xbf16>, vector<24x8xbf16>, vector<64x8xf32> -> vector<64x8xf32>
    %110 = arith.addf %101, %109 : vector<64x8xf32>
    %c1_69 = arith.constant 1 : index
    %c0_70 = arith.constant 0 : index
    %c0_71 = arith.constant 0 : index
    %111 = vector.load %arg8[%c1_69, %c0_70, %c0_71] : memref<10x10x8xbf16, #tpu.memory_space<vmem>>, vector<8x8x8xbf16>
    %c1_72 = arith.constant 1 : index
    %c1_73 = arith.constant 1 : index
    %c0_74 = arith.constant 0 : index
    %112 = vector.load %arg8[%c1_72, %c1_73, %c0_74] : memref<10x10x8xbf16, #tpu.memory_space<vmem>>, vector<8x8x8xbf16>
    %c1_75 = arith.constant 1 : index
    %c2_76 = arith.constant 2 : index
    %c0_77 = arith.constant 0 : index
    %113 = vector.load %arg8[%c1_75, %c2_76, %c0_77] : memref<10x10x8xbf16, #tpu.memory_space<vmem>>, vector<8x8x8xbf16>
    %114 = tpu.concatenate %111, %112, %113 in 2 : vector<8x8x8xbf16>, vector<8x8x8xbf16>, vector<8x8x8xbf16> -> vector<8x8x24xbf16>
    %115 = vector.shape_cast %114 : vector<8x8x24xbf16> to vector<64x24xbf16>
    %c1_78 = arith.constant 1 : index
    %c0_79 = arith.constant 0 : index
    %c0_80 = arith.constant 0 : index
    %116 = vector.load %arg3[%c1_78, %c0_79, %c0_80] : memref<3x24x8xbf16, #tpu.memory_space<vmem>>, vector<1x24x8xbf16>
    %117 = vector.shape_cast %116 : vector<1x24x8xbf16> to vector<24x8xbf16>
    %cst_81 = arith.constant dense<0.000000e+00> : vector<64x8xf32>
    %118 = tpu.matmul %115, %117, %cst_81 {dimension_numbers = #tpu.dot_dimension_numbers<[1], [0], [0], [1], [0, 0, 1, 1], [], []>} : vector<64x24xbf16>, vector<24x8xbf16>, vector<64x8xf32> -> vector<64x8xf32>
    %119 = arith.addf %110, %118 : vector<64x8xf32>
    %c2_82 = arith.constant 2 : index
    %c0_83 = arith.constant 0 : index
    %c0_84 = arith.constant 0 : index
    %120 = vector.load %arg8[%c2_82, %c0_83, %c0_84] : memref<10x10x8xbf16, #tpu.memory_space<vmem>>, vector<8x8x8xbf16>
    %c2_85 = arith.constant 2 : index
    %c1_86 = arith.constant 1 : index
    %c0_87 = arith.constant 0 : index
    %121 = vector.load %arg8[%c2_85, %c1_86, %c0_87] : memref<10x10x8xbf16, #tpu.memory_space<vmem>>, vector<8x8x8xbf16>
    %c2_88 = arith.constant 2 : index
    %c2_89 = arith.constant 2 : index
    %c0_90 = arith.constant 0 : index
    %122 = vector.load %arg8[%c2_88, %c2_89, %c0_90] : memref<10x10x8xbf16, #tpu.memory_space<vmem>>, vector<8x8x8xbf16>
    %123 = tpu.concatenate %120, %121, %122 in 2 : vector<8x8x8xbf16>, vector<8x8x8xbf16>, vector<8x8x8xbf16> -> vector<8x8x24xbf16>
    %124 = vector.shape_cast %123 : vector<8x8x24xbf16> to vector<64x24xbf16>
    %c2_91 = arith.constant 2 : index
    %c0_92 = arith.constant 0 : index
    %c0_93 = arith.constant 0 : index
    %125 = vector.load %arg3[%c2_91, %c0_92, %c0_93] : memref<3x24x8xbf16, #tpu.memory_space<vmem>>, vector<1x24x8xbf16>
    %126 = vector.shape_cast %125 : vector<1x24x8xbf16> to vector<24x8xbf16>
    %cst_94 = arith.constant dense<0.000000e+00> : vector<64x8xf32>
    %127 = tpu.matmul %124, %126, %cst_94 {dimension_numbers = #tpu.dot_dimension_numbers<[1], [0], [0], [1], [0, 0, 1, 1], [], []>} : vector<64x24xbf16>, vector<24x8xbf16>, vector<64x8xf32> -> vector<64x8xf32>
    %128 = arith.addf %119, %127 : vector<64x8xf32>
    %129 = vector.extract_strided_slice %55 {offsets = [0, 0, 0], sizes = [8, 8, 4], strides = [1, 1, 1]} : vector<9x9x4xbf16> to vector<8x8x4xbf16>
    %130 = vector.shape_cast %129 : vector<8x8x4xbf16> to vector<64x4xbf16>
    %c0_95 = arith.constant 0 : index
    %c0_96 = arith.constant 0 : index
    %131 = vector.load %arg4[%c0_95, %c0_96] : memref<4x8xbf16, #tpu.memory_space<vmem>>, vector<4x8xbf16>
    %cst_97 = arith.constant dense<0.000000e+00> : vector<64x8xf32>
    %132 = tpu.matmul %130, %131, %cst_97 {dimension_numbers = #tpu.dot_dimension_numbers<[1], [0], [0], [1], [0, 0, 1, 1], [], []>} : vector<64x4xbf16>, vector<4x8xbf16>, vector<64x8xf32> -> vector<64x8xf32>
    %133 = arith.addf %128, %132 : vector<64x8xf32>
    %c1_98 = arith.constant 1 : index
    %c0_99 = arith.constant 0 : index
    %134 = vector.load %arg6[%c1_98, %c0_99] : memref<2x8xf32, #tpu.memory_space<vmem>>, vector<1x8xf32>
    %135 = vector.broadcast %134 : vector<1x8xf32> to vector<64x8xf32>
    %136 = arith.addf %133, %135 : vector<64x8xf32>
    %137 = vector.shape_cast %136 : vector<64x8xf32> to vector<8x8x8xf32>
    %c0_100 = arith.constant 0 : index
    %c0_101 = arith.constant 0 : index
    %c0_102 = arith.constant 0 : index
    %c0_103 = arith.constant 0 : index
    %138 = vector.load %arg7[%c0_100, %c0_101, %c0_102, %c0_103] : memref<1x8x8x8xf32, #tpu.memory_space<vmem>>, vector<1x8x8x8xf32>
    %139 = vector.shape_cast %138 : vector<1x8x8x8xf32> to vector<8x8x8xf32>
    %140 = vector.shape_cast %137 : vector<8x8x8xf32> to vector<1x8x8x8xf32>
    tpu.vector_store %arg7[%c0_100, %c0_101, %c0_102, %c0_103], %140 {strides = array<i32>} : memref<1x8x8x8xf32, #tpu.memory_space<vmem>>, vector<1x8x8x8xf32>,
    return
  }
  func.func @transform_0(%arg0: i32) -> (i32, i32, i32, i32) {
    %c0_i32 = arith.constant 0 : i32
    %c0_i32_0 = arith.constant 0 : i32
    %c0_i32_1 = arith.constant 0 : i32
    %c0_i32_2 = arith.constant 0 : i32
    return %arg0, %c0_i32, %c0_i32_0, %c0_i32_1 : i32, i32, i32, i32
  }
  func.func @transform_1(%arg0: i32) -> (i32, i32, i32) {
    %c0_i32 = arith.constant 0 : i32
    %c0_i32_0 = arith.constant 0 : i32
    %c0_i32_1 = arith.constant 0 : i32
    %c0_i32_2 = arith.constant 0 : i32
    return %c0_i32, %c0_i32_0, %c0_i32_1 : i32, i32, i32
  }
  func.func @transform_2(%arg0: i32) -> (i32, i32, i32) {
    %c0_i32 = arith.constant 0 : i32
    %c0_i32_0 = arith.constant 0 : i32
    %c0_i32_1 = arith.constant 0 : i32
    %c0_i32_2 = arith.constant 0 : i32
    return %c0_i32, %c0_i32_0, %c0_i32_1 : i32, i32, i32
  }
  func.func @transform_3(%arg0: i32) -> (i32, i32) {
    %c0_i32 = arith.constant 0 : i32
    %c0_i32_0 = arith.constant 0 : i32
    %c0_i32_1 = arith.constant 0 : i32
    return %c0_i32, %c0_i32_0 : i32, i32
  }
  func.func @transform_4(%arg0: i32) -> (i32, i32) {
    %c0_i32 = arith.constant 0 : i32
    %c0_i32_0 = arith.constant 0 : i32
    %c0_i32_1 = arith.constant 0 : i32
    return %c0_i32, %c0_i32_0 : i32, i32
  }
  func.func @transform_5(%arg0: i32) -> (i32, i32) {
    %c0_i32 = arith.constant 0 : i32
    %c0_i32_0 = arith.constant 0 : i32
    %c0_i32_1 = arith.constant 0 : i32
    return %c0_i32, %c0_i32_0 : i32, i32
  }
  func.func @transform_6(%arg0: i32) -> (i32, i32, i32, i32) {
    %c0_i32 = arith.constant 0 : i32
    %c0_i32_0 = arith.constant 0 : i32
    %c0_i32_1 = arith.constant 0 : i32
    %c0_i32_2 = arith.constant 0 : i32
    return %arg0, %c0_i32, %c0_i32_0, %c0_i32_1 : i32, i32, i32, i32
  }
}

</mosaic_0001>

<llo_original>
// kernel: basic_block_forward.1
$region0: #{basic_block_forward.1}
  #allocation0 [shape = 'u32[]', space=smem, size = 0x4, offset = 0x4, fixed_abs, tag = 'smem constant byte address 0x4 - core index']
  #allocation1 [shape = 'u32[144,128]{1,0:T(1,128)}', space=vmem, size = 0x12000, scoped, tag = 'internal scratch']
  #allocation2 [shape = 'bf16[10,10,8]{2,1,0:T(8,128)(2,1)}', space=vmem, size = 0xa000, scoped, tag = 'scratch operand']
  %s0 = inlined_call_operand.vmem [shape: bf16[2,36,9,4], index: 0, kind: input, shape index: {}]
  %s1 = inlined_call_operand.vmem [shape: bf16[3,12,8], index: 1, kind: input, shape index: {}]
  %s2 = inlined_call_operand.vmem [shape: bf16[3,24,8], index: 2, kind: input, shape index: {}]
  %s3 = inlined_call_operand.vmem [shape: bf16[4,8], index: 3, kind: input, shape index: {}]
  %s4 = inlined_call_operand.vmem [shape: f32[2,4], index: 4, kind: input, shape index: {}]
  %s5 = inlined_call_operand.vmem [shape: f32[2,8], index: 5, kind: input, shape index: {}]
  %s6 = inlined_call_operand.vmem [shape: f32[2,8,8,8], index: 6, kind: output, shape index: {}]
  %s7 = sld [smem:[#allocation0]]
  $region57: #{basic_block_forward.1} parent=0
    _
  %s9 = ssub.s32 1, %s7
  %s10 = scalar_select 0, %s9, %s7
  loop: start=0, step=1, limit=4
  $region2: #{basic_block_forward.1} parent=0 // loop_pre_header
    _
  $region3: #{basic_block_forward.1} parent=0 // loop_header
    %s12 = sphi 0, %s16
    %p13 = scmp.ge.s32.totalorder %s12, 4
    %s22 = sphi 0, %s24
    %s25 = sphi 0, %s22
    %s26 = sphi 0, %s25
    %s42 = sphi 0, %s26
    %s46 = sphi 0, %s46
    %s48 = sphi 0, %s46
    %s49 = sphi 0, %s48
    %s63 = sphi 0, %s49
    %s67 = sphi 0, %s67
    %s69 = sphi 0, %s67
    %s70 = sphi 0, %s69
    %s84 = sphi 0, %s70
    %s88 = sphi 0, %s88
    %s90 = sphi 0, %s88
    %s91 = sphi 0, %s90
    %s105 = sphi 0, %s91
    %s109 = sphi 0, %s109
    %s111 = sphi 0, %s109
    %s112 = sphi 0, %s111
    %s126 = sphi 0, %s112
    %s130 = sphi 0, %s130
    %s132 = sphi 0, %s130
    %s133 = sphi 0, %s132
    %s147 = sphi 0, %s133
    %s153 = sphi 0, %s155
    %s156 = sphi 0, %s153
    %s157 = sphi 0, %s156
    %s173 = sphi 0, %s157
  $region4: #{basic_block_forward.1} parent=0 // loop_header_branch
    %15 = sbr.rel (%p13) target = $region8
  $region5: #{basic_block_forward.1} parent=0 // loop_body
    %s17 = ssub.s32 %s12, 1
    %s18 = ssub.s32 %s12, 2
    %s19 = sadd.s32 %s12, 1
    %s20 = ssub.s32 %s12, %s19
    %p21 = scmp.eq.s32.totalorder %s20, 0
    %s23 = sadd.s32 %s22, 1
    %s24 = scalar_select %p21, %s22, %s23
    %p27 = pneg %p21
    %p28 = scmp.eq.s32.totalorder %s12, 1
    %p29 = por %p27, %p28
    %p30 = scmp.ne.s32.totalorder %s22, %s25
    %p31 = scmp.eq.s32.totalorder %s12, 0
    %p32 = por %p30, %p31
    %p33 = scmp.ne.s32.totalorder %s22, %s25
    %p34 = scmp.eq.s32.totalorder %s17, 1
    %p35 = por %p33, %p34
    %p36 = scmp.ne.s32.totalorder %s25, %s26
    %p37 = scmp.eq.s32.totalorder %s17, 0
    %p38 = por %p36, %p37
    %p39 = scmp.ne.s32.totalorder %s25, %s26
    %p40 = scmp.eq.s32.totalorder %s18, 1
    %p41 = por %p39, %p40
    %p43 = scmp.ne.s32.totalorder %s26, %s42
    %p44 = scmp.eq.s32.totalorder %s18, 0
    %p45 = por %p43, %p44
    %s47 = sadd.s32 %s46, 1
    %p50 = scmp.eq.s32.totalorder %s12, 1
    %p51 = scmp.ne.s32.totalorder %s46, %s48
    %p52 = scmp.eq.s32.totalorder %s12, 0
    %p53 = por %p51, %p52
    %p54 = scmp.ne.s32.totalorder %s46, %s48
    %p55 = scmp.eq.s32.totalorder %s17, 1
    %p56 = por %p54, %p55
    %p57 = scmp.ne.s32.totalorder %s48, %s49
    %p58 = scmp.eq.s32.totalorder %s17, 0
    %p59 = por %p57, %p58
    %p60 = scmp.ne.s32.totalorder %s48, %s49
    %p61 = scmp.eq.s32.totalorder %s18, 1
    %p62 = por %p60, %p61
    %p64 = scmp.ne.s32.totalorder %s49, %s63
    %p65 = scmp.eq.s32.totalorder %s18, 0
    %p66 = por %p64, %p65
    %s68 = sadd.s32 %s67, 1
    %p71 = scmp.eq.s32.totalorder %s12, 1
    %p72 = scmp.ne.s32.totalorder %s67, %s69
    %p73 = scmp.eq.s32.totalorder %s12, 0
    %p74 = por %p72, %p73
    %p75 = scmp.ne.s32.totalorder %s67, %s69
    %p76 = scmp.eq.s32.totalorder %s17, 1
    %p77 = por %p75, %p76
    %p78 = scmp.ne.s32.totalorder %s69, %s70
    %p79 = scmp.eq.s32.totalorder %s17, 0
    %p80 = por %p78, %p79
    %p81 = scmp.ne.s32.totalorder %s69, %s70
    %p82 = scmp.eq.s32.totalorder %s18, 1
    %p83 = por %p81, %p82
    %p85 = scmp.ne.s32.totalorder %s70, %s84
    %p86 = scmp.eq.s32.totalorder %s18, 0
    %p87 = por %p85, %p86
    %s89 = sadd.s32 %s88, 1
    %p92 = scmp.eq.s32.totalorder %s12, 1
    %p93 = scmp.ne.s32.totalorder %s88, %s90
    %p94 = scmp.eq.s32.totalorder %s12, 0
    %p95 = por %p93, %p94
    %p96 = scmp.ne.s32.totalorder %s88, %s90
    %p97 = scmp.eq.s32.totalorder %s17, 1
    %p98 = por %p96, %p97
    %p99 = scmp.ne.s32.totalorder %s90, %s91
    %p100 = scmp.eq.s32.totalorder %s17, 0
    %p101 = por %p99, %p100
    %p102 = scmp.ne.s32.totalorder %s90, %s91
    %p103 = scmp.eq.s32.totalorder %s18, 1
    %p104 = por %p102, %p103
    %p106 = scmp.ne.s32.totalorder %s91, %s105
    %p107 = scmp.eq.s32.totalorder %s18, 0
    %p108 = por %p106, %p107
    %s110 = sadd.s32 %s109, 1
    %p113 = scmp.eq.s32.totalorder %s12, 1
    %p114 = scmp.ne.s32.totalorder %s109, %s111
    %p115 = scmp.eq.s32.totalorder %s12, 0
    %p116 = por %p114, %p115
    %p117 = scmp.ne.s32.totalorder %s109, %s111
    %p118 = scmp.eq.s32.totalorder %s17, 1
    %p119 = por %p117, %p118
    %p120 = scmp.ne.s32.totalorder %s111, %s112
    %p121 = scmp.eq.s32.totalorder %s17, 0
    %p122 = por %p120, %p121
    %p123 = scmp.ne.s32.totalorder %s111, %s112
    %p124 = scmp.eq.s32.totalorder %s18, 1
    %p125 = por %p123, %p124
    %p127 = scmp.ne.s32.totalorder %s112, %s126
    %p128 = scmp.eq.s32.totalorder %s18, 0
    %p129 = por %p127, %p128
    %s131 = sadd.s32 %s130, 1
    %p134 = scmp.eq.s32.totalorder %s12, 1
    %p135 = scmp.ne.s32.totalorder %s130, %s132
    %p136 = scmp.eq.s32.totalorder %s12, 0
    %p137 = por %p135, %p136
    %p138 = scmp.ne.s32.totalorder %s130, %s132
    %p139 = scmp.eq.s32.totalorder %s17, 1
    %p140 = por %p138, %p139
    %p141 = scmp.ne.s32.totalorder %s132, %s133
    %p142 = scmp.eq.s32.totalorder %s17, 0
    %p143 = por %p141, %p142
    %p144 = scmp.ne.s32.totalorder %s132, %s133
    %p145 = scmp.eq.s32.totalorder %s18, 1
    %p146 = por %p144, %p145
    %p148 = scmp.ne.s32.totalorder %s133, %s147
    %p149 = scmp.eq.s32.totalorder %s18, 0
    %p150 = por %p148, %p149
    %s151 = ssub.s32 %s12, %s19
    %p152 = scmp.eq.s32.totalorder %s151, 0
    %s154 = sadd.s32 %s153, 1
    %s155 = scalar_select %p152, %s153, %s154
    %p158 = pneg %p152
    %p159 = scmp.eq.s32.totalorder %s12, 1
    %p160 = por %p158, %p159
    %p161 = scmp.ne.s32.totalorder %s153, %s156
    %p162 = scmp.eq.s32.totalorder %s12, 0
    %p163 = por %p161, %p162
    %p164 = scmp.ne.s32.totalorder %s153, %s156
    %p165 = scmp.eq.s32.totalorder %s17, 1
    %p166 = por %p164, %p165
    %p167 = scmp.ne.s32.totalorder %s156, %s157
    %p168 = scmp.eq.s32.totalorder %s17, 0
    %p169 = por %p167, %p168
    %p170 = scmp.ne.s32.totalorder %s156, %s157
    %p171 = scmp.eq.s32.totalorder %s18, 1
    %p172 = por %p170, %p171
    %p174 = scmp.ne.s32.totalorder %s157, %s173
    %p175 = scmp.eq.s32.totalorder %s18, 0
    %p176 = por %p174, %p175
    %p177 = scmp.le.s32.totalorder 1, %s12
    %p178 = scmp.lt.s32.totalorder %s12, 3
    %p179 = pnand %p177, %p178
    %p180 = pneg %p179
    // Predicated region
    $region9: #{basic_block_forward.1} parent=5 // pred_check
      _
    $region10: #{basic_block_forward.1} parent=5 // pred_check_branch
      %182 = sbr.rel (%p179) target = $region12
    $region11: #{basic_block_forward.1} parent=5 // pred_region
      %s183 = ssub.s32 %s12, 1
      // Predicated region
      $region13: #{basic_block_forward.1} parent=11 // pred_check
        %p184 = pneg %p59
      $region14: #{basic_block_forward.1} parent=11 // pred_check_branch
        %186 = sbr.rel (%p184) target = $region16
      $region15: #{basic_block_forward.1} parent=11 // pred_region
        _
      $region16: #{basic_block_forward.1} parent=11 // pred_fallthru
        _
      // Predicated region
      $region17: #{basic_block_forward.1} parent=11 // pred_check
        %p187 = pneg %p80
      $region18: #{basic_block_forward.1} parent=11 // pred_check_branch
        %189 = sbr.rel (%p187) target = $region20
      $region19: #{basic_block_forward.1} parent=11 // pred_region
        _
      $region20: #{basic_block_forward.1} parent=11 // pred_fallthru
        _
      // Predicated region
      $region21: #{basic_block_forward.1} parent=11 // pred_check
        %p190 = pneg %p101
      $region22: #{basic_block_forward.1} parent=11 // pred_check_branch
        %192 = sbr.rel (%p190) target = $region24
      $region23: #{basic_block_forward.1} parent=11 // pred_region
        _
      $region24: #{basic_block_forward.1} parent=11 // pred_fallthru
        _
      // Predicated region
      $region25: #{basic_block_forward.1} parent=11 // pred_check
        %p193 = pneg %p122
      $region26: #{basic_block_forward.1} parent=11 // pred_check_branch
        %195 = sbr.rel (%p193) target = $region28
      $region27: #{basic_block_forward.1} parent=11 // pred_region
        _
      $region28: #{basic_block_forward.1} parent=11 // pred_fallthru
        _
      // Predicated region
      $region29: #{basic_block_forward.1} parent=11 // pred_check
        %p196 = pneg %p143
      $region30: #{basic_block_forward.1} parent=11 // pred_check_branch
        %198 = sbr.rel (%p196) target = $region32
      $region31: #{basic_block_forward.1} parent=11 // pred_region
        _
      $region32: #{basic_block_forward.1} parent=11 // pred_fallthru
        _
    $region12: #{basic_block_forward.1} parent=5 // pred_fallthru
      _
    %p199 = scmp.lt.s32.totalorder %s12, 2
    // Predicated region
    $region33: #{basic_block_forward.1} parent=5 // pred_check
      %p200 = pneg %p199
    $region34: #{basic_block_forward.1} parent=5 // pred_check_branch
      %202 = sbr.rel (%p200) target = $region36
    $region35: #{basic_block_forward.1} parent=5 // pred_region
      // Predicated region
      $region37: #{basic_block_forward.1} parent=35 // pred_check
        %p203 = pneg %p32
      $region38: #{basic_block_forward.1} parent=35 // pred_check_branch
        %205 = sbr.rel (%p203) target = $region40
      $region39: #{basic_block_forward.1} parent=35 // pred_region
        %p206 = scmp.lt.s32.totalorder %s12, 1
        %s207 = scalar_select %p206, %s12, 1
        %s208 = smul.addr %s207, 72
        %s209 = smul.addr %s208, 4
        %s210 = scalar_lea.vmem %s0, %s209
      $region40: #{basic_block_forward.1} parent=35 // pred_fallthru
        _
    $region36: #{basic_block_forward.1} parent=5 // pred_fallthru
      _
    %p211 = scmp.le.s32.totalorder 1, %s12
    %p212 = scmp.lt.s32.totalorder %s12, 3
    %p213 = pnand %p211, %p212
    %p214 = pneg %p213
    // Predicated region
    $region41: #{basic_block_forward.1} parent=5 // pred_check
      _
    $region42: #{basic_block_forward.1} parent=5 // pred_check_branch
      %216 = sbr.rel (%p213) target = $region44
    $region43: #{basic_block_forward.1} parent=5 // pred_region
      %s217 = ssub.s32 %s12, 1
      %p218 = scmp.lt.s32.totalorder %s17, 1
      %s219 = scalar_select %p218, %s17, 1
      %s220 = smul.addr %s219, 72
      %s221 = smul.addr %s220, 4
      %s222 = scalar_lea.vmem %s0, %s221
      %p223 = pneg %p38
      %p224 = pneg %p35
      %p225 = pneg %p59
      %p226 = pneg %p56
      %p227 = pneg %p80
      %p228 = pneg %p77
      %p229 = pneg %p101
      %p230 = pneg %p98
      %p231 = pneg %p122
      %p232 = pneg %p119
      %p233 = pneg %p143
      %p234 = pneg %p140
      %p235 = pneg %p169
      %p236 = pneg %p166
      %p237 = scmp.lt.s32.totalorder %s17, 1
      %s238 = scalar_select %p237, %s17, 1
      %s239 = smul.addr %s238, 8
      %s240 = smul.addr %s239, 8
      %s241 = scalar_lea.vmem %s6, %s240
      %p242 = scmp.lt.s32.totalorder %s17, 1
      %s243 = scalar_select %p242, %s17, 1
      %s244 = smul.addr %s243, 72
      %s245 = smul.addr %s244, 4
      %s246 = scalar_lea.vmem %s0, %s245
      %p247 = scmp.lt.s32.totalorder %s17, 1
      %s248 = scalar_select %p247, %s17, 1
      %s249 = smul.addr %s248, 8
      %s250 = smul.addr %s249, 8
      %s251 = scalar_lea.vmem %s6, %s250
      %v253 = vld [vmem:[%s246] sm:$0xf]
      %v254 = vld [vmem:[%s246 + $0x4] sm:$0x1]
      %v255 = vld [vmem:[%s246 + $0x8] sm:$0xf]
      %v256 = vld [vmem:[%s246 + $0xc] sm:$0x1]
      %v257 = vld [vmem:[%s246 + $0x10] sm:$0xf]
      %v258 = vld [vmem:[%s246 + $0x14] sm:$0x1]
      %v259 = vld [vmem:[%s246 + $0x18] sm:$0xf]
      %v260 = vld [vmem:[%s246 + $0x1c] sm:$0x1]
      %v261 = vld [vmem:[%s246 + $0x20] sm:$0xf]
      %v262 = vld [vmem:[%s246 + $0x24] sm:$0x1]
      %v263 = vld [vmem:[%s246 + $0x28] sm:$0xf]
      %v264 = vld [vmem:[%s246 + $0x2c] sm:$0x1]
      %v265 = vld [vmem:[%s246 + $0x30] sm:$0xf]
      %v266 = vld [vmem:[%s246 + $0x34] sm:$0x1]
      %v267 = vld [vmem:[%s246 + $0x38] sm:$0xf]
      %v268 = vld [vmem:[%s246 + $0x3c] sm:$0x1]
      %v269 = vld [vmem:[%s246 + $0x40] sm:$0xf]
      %v270 = vld [vmem:[%s246 + $0x44] sm:$0x1]
      %s271 = scalar_lea.vmem %s246, 72
      %v272 = vld [vmem:[%s271] sm:$0xf]
      %v273 = vld [vmem:[%s271 + $0x4] sm:$0x1]
      %v274 = vld [vmem:[%s271 + $0x8] sm:$0xf]
      %v275 = vld [vmem:[%s271 + $0xc] sm:$0x1]
      %v276 = vld [vmem:[%s271 + $0x10] sm:$0xf]
      %v277 = vld [vmem:[%s271 + $0x14] sm:$0x1]
      %v278 = vld [vmem:[%s271 + $0x18] sm:$0xf]
      %v279 = vld [vmem:[%s271 + $0x1c] sm:$0x1]
      %v280 = vld [vmem:[%s271 + $0x20] sm:$0xf]
      %v281 = vld [vmem:[%s271 + $0x24] sm:$0x1]
      %v282 = vld [vmem:[%s271 + $0x28] sm:$0xf]
      %v283 = vld [vmem:[%s271 + $0x2c] sm:$0x1]
      %v284 = vld [vmem:[%s271 + $0x30] sm:$0xf]
      %v285 = vld [vmem:[%s271 + $0x34] sm:$0x1]
      %v286 = vld [vmem:[%s271 + $0x38] sm:$0xf]
      %v287 = vld [vmem:[%s271 + $0x3c] sm:$0x1]
      %v288 = vld [vmem:[%s271 + $0x40] sm:$0xf]
      %v289 = vld [vmem:[%s271 + $0x44] sm:$0x1]
      %s290 = scalar_lea.vmem %s246, 144
      %v291 = vld [vmem:[%s290] sm:$0xf]
      %v292 = vld [vmem:[%s290 + $0x4] sm:$0x1]
      %v293 = vld [vmem:[%s290 + $0x8] sm:$0xf]
      %v294 = vld [vmem:[%s290 + $0xc] sm:$0x1]
      %v295 = vld [vmem:[%s290 + $0x10] sm:$0xf]
      %v296 = vld [vmem:[%s290 + $0x14] sm:$0x1]
      %v297 = vld [vmem:[%s290 + $0x18] sm:$0xf]
      %v298 = vld [vmem:[%s290 + $0x1c] sm:$0x1]
      %v299 = vld [vmem:[%s290 + $0x20] sm:$0xf]
      %v300 = vld [vmem:[%s290 + $0x24] sm:$0x1]
      %v301 = vld [vmem:[%s290 + $0x28] sm:$0xf]
      %v302 = vld [vmem:[%s290 + $0x2c] sm:$0x1]
      %v303 = vld [vmem:[%s290 + $0x30] sm:$0xf]
      %v304 = vld [vmem:[%s290 + $0x34] sm:$0x1]
      %v305 = vld [vmem:[%s290 + $0x38] sm:$0xf]
      %v306 = vld [vmem:[%s290 + $0x3c] sm:$0x1]
      %s307 = scalar_lea.vmem %s246, 216
      %v308 = vld [vmem:[%s307] sm:$0xf]
      %v309 = vld [vmem:[%s307 + $0x4] sm:$0x1]
      %v310 = vld [vmem:[%s307 + $0x8] sm:$0xf]
      %v311 = vld [vmem:[%s307 + $0xc] sm:$0x1]
      %v312 = vld [vmem:[%s307 + $0x10] sm:$0xf]
      %v313 = vld [vmem:[%s307 + $0x14] sm:$0x1]
      %v314 = vld [vmem:[%s307 + $0x18] sm:$0xf]
      %v315 = vld [vmem:[%s307 + $0x1c] sm:$0x1]
      %v316 = vld [vmem:[%s307 + $0x20] sm:$0xf]
      %v317 = vld [vmem:[%s307 + $0x24] sm:$0x1]
      %v318 = vld [vmem:[%s307 + $0x28] sm:$0xf]
      %v319 = vld [vmem:[%s307 + $0x2c] sm:$0x1]
      %v320 = vld [vmem:[%s307 + $0x30] sm:$0xf]
      %v321 = vld [vmem:[%s307 + $0x34] sm:$0x1]
      %v322 = vld [vmem:[%s307 + $0x38] sm:$0xf]
      %v323 = vld [vmem:[%s307 + $0x3c] sm:$0x1]
      %v324 = vld [vmem:[%s4] sm:$0x1]
      %v325 = vld [vmem:[%s4 + $0x1] sm:$0x1]
      %v326 = vunpack.c.l.bf16 %v253
      %v327 = vunpack.c.l.bf16 %v254
      %v328 = vunpack.c.l.bf16 %v255
      %v329 = vunpack.c.l.bf16 %v256
      %v330 = vunpack.c.l.bf16 %v257
      %v331 = vunpack.c.l.bf16 %v258
      %v332 = vunpack.c.l.bf16 %v259
      %v333 = vunpack.c.l.bf16 %v260
      %v334 = vunpack.c.l.bf16 %v261
      %v335 = vunpack.c.l.bf16 %v262
      %v336 = vunpack.c.l.bf16 %v263
      %v337 = vunpack.c.l.bf16 %v264
      %v338 = vunpack.c.l.bf16 %v265
      %v339 = vunpack.c.l.bf16 %v266
      %v340 = vunpack.c.l.bf16 %v267
      %v341 = vunpack.c.l.bf16 %v268
      %v342 = vunpack.c.l.bf16 %v269
      %v343 = vunpack.c.l.bf16 %v270
      %v344 = vlaneseq
      %v345 = vshrl.u32 %v344, 7
      %v346 = vsub.s32 0, %v345
      %v347 = vrot.slane %v324, %v346
      %v348 = vmul.f32 %v326, %v347
      %v349 = vmul.f32 %v327, %v347
      %v350 = vmul.f32 %v328, %v347
      %v351 = vmul.f32 %v329, %v347
      %v352 = vmul.f32 %v330, %v347
      %v353 = vmul.f32 %v331, %v347
      %v354 = vmul.f32 %v332, %v347
      %v355 = vmul.f32 %v333, %v347
      %v356 = vmul.f32 %v334, %v347
      %v357 = vmul.f32 %v335, %v347
      %v358 = vmul.f32 %v336, %v347
      %v359 = vmul.f32 %v337, %v347
      %v360 = vmul.f32 %v338, %v347
      %v361 = vmul.f32 %v339, %v347
      %v362 = vmul.f32 %v340, %v347
      %v363 = vmul.f32 %v341, %v347
      %v364 = vmul.f32 %v342, %v347
      %v365 = vmul.f32 %v343, %v347
      %v366 = vlaneseq
      %v367 = vshrl.u32 %v366, 7
      %v368 = vsub.s32 0, %v367
      %v369 = vrot.slane %v325, %v368
      %v370 = vadd.f32 %v348, %v369
      %v371 = vadd.f32 %v349, %v369
      %v372 = vadd.f32 %v350, %v369
      %v373 = vadd.f32 %v351, %v369
      %v374 = vadd.f32 %v352, %v369
      %v375 = vadd.f32 %v353, %v369
      %v376 = vadd.f32 %v354, %v369
      %v377 = vadd.f32 %v355, %v369
      %v378 = vadd.f32 %v356, %v369
      %v379 = vadd.f32 %v357, %v369
      %v380 = vadd.f32 %v358, %v369
      %v381 = vadd.f32 %v359, %v369
      %v382 = vadd.f32 %v360, %v369
      %v383 = vadd.f32 %v361, %v369
      %v384 = vadd.f32 %v362, %v369
      %v385 = vadd.f32 %v363, %v369
      %v386 = vadd.f32 %v364, %v369
      %v387 = vadd.f32 %v365, %v369
      %vm388 = vcmp.ge.f32.partialorder %v370, 0.0
      %vm389 = vcmp.ge.f32.partialorder %v371, 0.0
      %vm390 = vcmp.ge.f32.partialorder %v372, 0.0
      %vm391 = vcmp.ge.f32.partialorder %v373, 0.0
      %vm392 = vcmp.ge.f32.partialorder %v374, 0.0
      %vm393 = vcmp.ge.f32.partialorder %v375, 0.0
      %vm394 = vcmp.ge.f32.partialorder %v376, 0.0
      %vm395 = vcmp.ge.f32.partialorder %v377, 0.0
      %vm396 = vcmp.ge.f32.partialorder %v378, 0.0
      %vm397 = vcmp.ge.f32.partialorder %v379, 0.0
      %vm398 = vcmp.ge.f32.partialorder %v380, 0.0
      %vm399 = vcmp.ge.f32.partialorder %v381, 0.0
      %vm400 = vcmp.ge.f32.partialorder %v382, 0.0
      %vm401 = vcmp.ge.f32.partialorder %v383, 0.0
      %vm402 = vcmp.ge.f32.partialorder %v384, 0.0
      %vm403 = vcmp.ge.f32.partialorder %v385, 0.0
      %vm404 = vcmp.ge.f32.partialorder %v386, 0.0
      %vm405 = vcmp.ge.f32.partialorder %v387, 0.0
      %v406 = vmul.f32 %v370, 0.1
      %v407 = vmul.f32 %v371, 0.1
      %v408 = vmul.f32 %v372, 0.1
      %v409 = vmul.f32 %v373, 0.1
      %v410 = vmul.f32 %v374, 0.1
      %v411 = vmul.f32 %v375, 0.1
      %v412 = vmul.f32 %v376, 0.1
      %v413 = vmul.f32 %v377, 0.1
      %v414 = vmul.f32 %v378, 0.1
      %v415 = vmul.f32 %v379, 0.1
      %v416 = vmul.f32 %v380, 0.1
      %v417 = vmul.f32 %v381, 0.1
      %v418 = vmul.f32 %v382, 0.1
      %v419 = vmul.f32 %v383, 0.1
      %v420 = vmul.f32 %v384, 0.1
      %v421 = vmul.f32 %v385, 0.1
      %v422 = vmul.f32 %v386, 0.1
      %v423 = vmul.f32 %v387, 0.1
      %v424 = vsel %vm388, %v370, %v406
      %v425 = vsel %vm389, %v371, %v407
      %v426 = vsel %vm390, %v372, %v408
      %v427 = vsel %vm391, %v373, %v409
      %v428 = vsel %vm392, %v374, %v410
      %v429 = vsel %vm393, %v375, %v411
      %v430 = vsel %vm394, %v376, %v412
      %v431 = vsel %vm395, %v377, %v413
      %v432 = vsel %vm396, %v378, %v414
      %v433 = vsel %vm397, %v379, %v415
      %v434 = vsel %vm398, %v380, %v416
      %v435 = vsel %vm399, %v381, %v417
      %v436 = vsel %vm400, %v382, %v418
      %v437 = vsel %vm401, %v383, %v419
      %v438 = vsel %vm402, %v384, %v420
      %v439 = vsel %vm403, %v385, %v421
      %v440 = vsel %vm404, %v386, %v422
      %v441 = vsel %vm405, %v387, %v423
      %v442 = vpack.c.bf16 %v425, %v424
      %v443 = vpack.c.bf16 %v427, %v426
      %v444 = vpack.c.bf16 %v429, %v428
      %v445 = vpack.c.bf16 %v431, %v430
      %v446 = vpack.c.bf16 %v433, %v432
      %v447 = vpack.c.bf16 %v435, %v434
      %v448 = vpack.c.bf16 %v437, %v436
      %v449 = vpack.c.bf16 %v439, %v438
      %v450 = vpack.c.bf16 %v441, %v440
      %v451 = vunpack.c.l.bf16 %v272
      %v452 = vunpack.c.l.bf16 %v273
      %v453 = vunpack.c.l.bf16 %v274
      %v454 = vunpack.c.l.bf16 %v275
      %v455 = vunpack.c.l.bf16 %v276
      %v456 = vunpack.c.l.bf16 %v277
      %v457 = vunpack.c.l.bf16 %v278
      %v458 = vunpack.c.l.bf16 %v279
      %v459 = vunpack.c.l.bf16 %v280
      %v460 = vunpack.c.l.bf16 %v281
      %v461 = vunpack.c.l.bf16 %v282
      %v462 = vunpack.c.l.bf16 %v283
      %v463 = vunpack.c.l.bf16 %v284
      %v464 = vunpack.c.l.bf16 %v285
      %v465 = vunpack.c.l.bf16 %v286
      %v466 = vunpack.c.l.bf16 %v287
      %v467 = vunpack.c.l.bf16 %v288
      %v468 = vunpack.c.l.bf16 %v289
      %v469 = vmul.f32 %v451, %v347
      %v470 = vmul.f32 %v452, %v347
      %v471 = vmul.f32 %v453, %v347
      %v472 = vmul.f32 %v454, %v347
      %v473 = vmul.f32 %v455, %v347
      %v474 = vmul.f32 %v456, %v347
      %v475 = vmul.f32 %v457, %v347
      %v476 = vmul.f32 %v458, %v347
      %v477 = vmul.f32 %v459, %v347
      %v478 = vmul.f32 %v460, %v347
      %v479 = vmul.f32 %v461, %v347
      %v480 = vmul.f32 %v462, %v347
      %v481 = vmul.f32 %v463, %v347
      %v482 = vmul.f32 %v464, %v347
      %v483 = vmul.f32 %v465, %v347
      %v484 = vmul.f32 %v466, %v347
      %v485 = vmul.f32 %v467, %v347
      %v486 = vmul.f32 %v468, %v347
      %v487 = vadd.f32 %v469, %v369
      %v488 = vadd.f32 %v470, %v369
      %v489 = vadd.f32 %v471, %v369
      %v490 = vadd.f32 %v472, %v369
      %v491 = vadd.f32 %v473, %v369
      %v492 = vadd.f32 %v474, %v369
      %v493 = vadd.f32 %v475, %v369
      %v494 = vadd.f32 %v476, %v369
      %v495 = vadd.f32 %v477, %v369
      %v496 = vadd.f32 %v478, %v369
      %v497 = vadd.f32 %v479, %v369
      %v498 = vadd.f32 %v480, %v369
      %v499 = vadd.f32 %v481, %v369
      %v500 = vadd.f32 %v482, %v369
      %v501 = vadd.f32 %v483, %v369
      %v502 = vadd.f32 %v484, %v369
      %v503 = vadd.f32 %v485, %v369
      %v504 = vadd.f32 %v486, %v369
      %vm505 = vcmp.ge.f32.partialorder %v487, 0.0
      %vm506 = vcmp.ge.f32.partialorder %v488, 0.0
      %vm507 = vcmp.ge.f32.partialorder %v489, 0.0
      %vm508 = vcmp.ge.f32.partialorder %v490, 0.0
      %vm509 = vcmp.ge.f32.partialorder %v491, 0.0
      %vm510 = vcmp.ge.f32.partialorder %v492, 0.0
      %vm511 = vcmp.ge.f32.partialorder %v493, 0.0
      %vm512 = vcmp.ge.f32.partialorder %v494, 0.0
      %vm513 = vcmp.ge.f32.partialorder %v495, 0.0
      %vm514 = vcmp.ge.f32.partialorder %v496, 0.0
      %vm515 = vcmp.ge.f32.partialorder %v497, 0.0
      %vm516 = vcmp.ge.f32.partialorder %v498, 0.0
      %vm517 = vcmp.ge.f32.partialorder %v499, 0.0
      %vm518 = vcmp.ge.f32.partialorder %v500, 0.0
      %vm519 = vcmp.ge.f32.partialorder %v501, 0.0
      %vm520 = vcmp.ge.f32.partialorder %v502, 0.0
      %vm521 = vcmp.ge.f32.partialorder %v503, 0.0
      %vm522 = vcmp.ge.f32.partialorder %v504, 0.0
      %v523 = vmul.f32 %v487, 0.1
      %v524 = vmul.f32 %v488, 0.1
      %v525 = vmul.f32 %v489, 0.1
      %v526 = vmul.f32 %v490, 0.1
      %v527 = vmul.f32 %v491, 0.1
      %v528 = vmul.f32 %v492, 0.1
      %v529 = vmul.f32 %v493, 0.1
      %v530 = vmul.f32 %v494, 0.1
      %v531 = vmul.f32 %v495, 0.1
      %v532 = vmul.f32 %v496, 0.1
      %v533 = vmul.f32 %v497, 0.1
      %v534 = vmul.f32 %v498, 0.1
      %v535 = vmul.f32 %v499, 0.1
      %v536 = vmul.f32 %v500, 0.1
      %v537 = vmul.f32 %v501, 0.1
      %v538 = vmul.f32 %v502, 0.1
      %v539 = vmul.f32 %v503, 0.1
      %v540 = vmul.f32 %v504, 0.1
      %v541 = vsel %vm505, %v487, %v523
      %v542 = vsel %vm506, %v488, %v524
      %v543 = vsel %vm507, %v489, %v525
      %v544 = vsel %vm508, %v490, %v526
      %v545 = vsel %vm509, %v491, %v527
      %v546 = vsel %vm510, %v492, %v528
      %v547 = vsel %vm511, %v493, %v529
      %v548 = vsel %vm512, %v494, %v530
      %v549 = vsel %vm513, %v495, %v531
      %v550 = vsel %vm514, %v496, %v532
      %v551 = vsel %vm515, %v497, %v533
      %v552 = vsel %vm516, %v498, %v534
      %v553 = vsel %vm517, %v499, %v535
      %v554 = vsel %vm518, %v500, %v536
      %v555 = vsel %vm519, %v501, %v537
      %v556 = vsel %vm520, %v502, %v538
      %v557 = vsel %vm521, %v503, %v539
      %v558 = vsel %vm522, %v504, %v540
      %v559 = vpack.c.bf16 %v542, %v541
      %v560 = vpack.c.bf16 %v544, %v543
      %v561 = vpack.c.bf16 %v546, %v545
      %v562 = vpack.c.bf16 %v548, %v547
      %v563 = vpack.c.bf16 %v550, %v549
      %v564 = vpack.c.bf16 %v552, %v551
      %v565 = vpack.c.bf16 %v554, %v553
      %v566 = vpack.c.bf16 %v556, %v555
      %v567 = vpack.c.bf16 %v558, %v557
      %v568 = vunpack.c.l.bf16 %v291
      %v569 = vunpack.c.l.bf16 %v292
      %v570 = vunpack.c.l.bf16 %v293
      %v571 = vunpack.c.l.bf16 %v294
      %v572 = vunpack.c.l.bf16 %v295
      %v573 = vunpack.c.l.bf16 %v296
      %v574 = vunpack.c.l.bf16 %v297
      %v575 = vunpack.c.l.bf16 %v298
      %v576 = vunpack.c.l.bf16 %v299
      %v577 = vunpack.c.l.bf16 %v300
      %v578 = vunpack.c.l.bf16 %v301
      %v579 = vunpack.c.l.bf16 %v302
      %v580 = vunpack.c.l.bf16 %v303
      %v581 = vunpack.c.l.bf16 %v304
      %v582 = vunpack.c.l.bf16 %v305
      %v583 = vunpack.c.l.bf16 %v306
      %v584 = vmul.f32 %v568, %v347
      %v585 = vmul.f32 %v569, %v347
      %v586 = vmul.f32 %v570, %v347
      %v587 = vmul.f32 %v571, %v347
      %v588 = vmul.f32 %v572, %v347
      %v589 = vmul.f32 %v573, %v347
      %v590 = vmul.f32 %v574, %v347
      %v591 = vmul.f32 %v575, %v347
      %v592 = vmul.f32 %v576, %v347
      %v593 = vmul.f32 %v577, %v347
      %v594 = vmul.f32 %v578, %v347
      %v595 = vmul.f32 %v579, %v347
      %v596 = vmul.f32 %v580, %v347
      %v597 = vmul.f32 %v581, %v347
      %v598 = vmul.f32 %v582, %v347
      %v599 = vmul.f32 %v583, %v347
      %v600 = vadd.f32 %v584, %v369
      %v601 = vadd.f32 %v585, %v369
      %v602 = vadd.f32 %v586, %v369
      %v603 = vadd.f32 %v587, %v369
      %v604 = vadd.f32 %v588, %v369
      %v605 = vadd.f32 %v589, %v369
      %v606 = vadd.f32 %v590, %v369
      %v607 = vadd.f32 %v591, %v369
      %v608 = vadd.f32 %v592, %v369
      %v609 = vadd.f32 %v593, %v369
      %v610 = vadd.f32 %v594, %v369
      %v611 = vadd.f32 %v595, %v369
      %v612 = vadd.f32 %v596, %v369
      %v613 = vadd.f32 %v597, %v369
      %v614 = vadd.f32 %v598, %v369
      %v615 = vadd.f32 %v599, %v369
      %vm616 = vcmp.ge.f32.partialorder %v600, 0.0
      %vm617 = vcmp.ge.f32.partialorder %v601, 0.0
      %vm618 = vcmp.ge.f32.partialorder %v602, 0.0
      %vm619 = vcmp.ge.f32.partialorder %v603, 0.0
      %vm620 = vcmp.ge.f32.partialorder %v604, 0.0
      %vm621 = vcmp.ge.f32.partialorder %v605, 0.0
      %vm622 = vcmp.ge.f32.partialorder %v606, 0.0
      %vm623 = vcmp.ge.f32.partialorder %v607, 0.0
      %vm624 = vcmp.ge.f32.partialorder %v608, 0.0
      %vm625 = vcmp.ge.f32.partialorder %v609, 0.0
      %vm626 = vcmp.ge.f32.partialorder %v610, 0.0
      %vm627 = vcmp.ge.f32.partialorder %v611, 0.0
      %vm628 = vcmp.ge.f32.partialorder %v612, 0.0
      %vm629 = vcmp.ge.f32.partialorder %v613, 0.0
      %vm630 = vcmp.ge.f32.partialorder %v614, 0.0
      %vm631 = vcmp.ge.f32.partialorder %v615, 0.0
      %v632 = vmul.f32 %v600, 0.1
      %v633 = vmul.f32 %v601, 0.1
      %v634 = vmul.f32 %v602, 0.1
      %v635 = vmul.f32 %v603, 0.1
      %v636 = vmul.f32 %v604, 0.1
      %v637 = vmul.f32 %v605, 0.1
      %v638 = vmul.f32 %v606, 0.1
      %v639 = vmul.f32 %v607, 0.1
      %v640 = vmul.f32 %v608, 0.1
      %v641 = vmul.f32 %v609, 0.1
      %v642 = vmul.f32 %v610, 0.1
      %v643 = vmul.f32 %v611, 0.1
      %v644 = vmul.f32 %v612, 0.1
      %v645 = vmul.f32 %v613, 0.1
      %v646 = vmul.f32 %v614, 0.1
      %v647 = vmul.f32 %v615, 0.1
      %v648 = vsel %vm616, %v600, %v632
      %v649 = vsel %vm617, %v601, %v633
      %v650 = vsel %vm618, %v602, %v634
      %v651 = vsel %vm619, %v603, %v635
      %v652 = vsel %vm620, %v604, %v636
      %v653 = vsel %vm621, %v605, %v637
      %v654 = vsel %vm622, %v606, %v638
      %v655 = vsel %vm623, %v607, %v639
      %v656 = vsel %vm624, %v608, %v640
      %v657 = vsel %vm625, %v609, %v641
      %v658 = vsel %vm626, %v610, %v642
      %v659 = vsel %vm627, %v611, %v643
      %v660 = vsel %vm628, %v612, %v644
      %v661 = vsel %vm629, %v613, %v645
      %v662 = vsel %vm630, %v614, %v646
      %v663 = vsel %vm631, %v615, %v647
      %v664 = vpack.c.bf16 %v649, %v648
      %v665 = vpack.c.bf16 %v651, %v650
      %v666 = vpack.c.bf16 %v653, %v652
      %v667 = vpack.c.bf16 %v655, %v654
      %v668 = vpack.c.bf16 %v657, %v656
      %v669 = vpack.c.bf16 %v659, %v658
      %v670 = vpack.c.bf16 %v661, %v660
      %v671 = vpack.c.bf16 %v663, %v662
      %v672 = vunpack.c.l.bf16 %v308
      %v673 = vunpack.c.l.bf16 %v309
      %v674 = vunpack.c.l.bf16 %v310
      %v675 = vunpack.c.l.bf16 %v311
      %v676 = vunpack.c.l.bf16 %v312
      %v677 = vunpack.c.l.bf16 %v313
      %v678 = vunpack.c.l.bf16 %v314
      %v679 = vunpack.c.l.bf16 %v315
      %v680 = vunpack.c.l.bf16 %v316
      %v681 = vunpack.c.l.bf16 %v317
      %v682 = vunpack.c.l.bf16 %v318
      %v683 = vunpack.c.l.bf16 %v319
      %v684 = vunpack.c.l.bf16 %v320
      %v685 = vunpack.c.l.bf16 %v321
      %v686 = vunpack.c.l.bf16 %v322
      %v687 = vunpack.c.l.bf16 %v323
      %v688 = vmul.f32 %v672, %v347
      %v689 = vmul.f32 %v673, %v347
      %v690 = vmul.f32 %v674, %v347
      %v691 = vmul.f32 %v675, %v347
      %v692 = vmul.f32 %v676, %v347
      %v693 = vmul.f32 %v677, %v347
      %v694 = vmul.f32 %v678, %v347
      %v695 = vmul.f32 %v679, %v347
      %v696 = vmul.f32 %v680, %v347
      %v697 = vmul.f32 %v681, %v347
      %v698 = vmul.f32 %v682, %v347
      %v699 = vmul.f32 %v683, %v347
      %v700 = vmul.f32 %v684, %v347
      %v701 = vmul.f32 %v685, %v347
      %v702 = vmul.f32 %v686, %v347
      %v703 = vmul.f32 %v687, %v347
      %v704 = vadd.f32 %v688, %v369
      %v705 = vadd.f32 %v689, %v369
      %v706 = vadd.f32 %v690, %v369
      %v707 = vadd.f32 %v691, %v369
      %v708 = vadd.f32 %v692, %v369
      %v709 = vadd.f32 %v693, %v369
      %v710 = vadd.f32 %v694, %v369
      %v711 = vadd.f32 %v695, %v369
      %v712 = vadd.f32 %v696, %v369
      %v713 = vadd.f32 %v697, %v369
      %v714 = vadd.f32 %v698, %v369
      %v715 = vadd.f32 %v699, %v369
      %v716 = vadd.f32 %v700, %v369
      %v717 = vadd.f32 %v701, %v369
      %v718 = vadd.f32 %v702, %v369
      %v719 = vadd.f32 %v703, %v369
      %vm720 = vcmp.ge.f32.partialorder %v704, 0.0
      %vm721 = vcmp.ge.f32.partialorder %v705, 0.0
      %vm722 = vcmp.ge.f32.partialorder %v706, 0.0
      %vm723 = vcmp.ge.f32.partialorder %v707, 0.0
      %vm724 = vcmp.ge.f32.partialorder %v708, 0.0
      %vm725 = vcmp.ge.f32.partialorder %v709, 0.0
      %vm726 = vcmp.ge.f32.partialorder %v710, 0.0
      %vm727 = vcmp.ge.f32.partialorder %v711, 0.0
      %vm728 = vcmp.ge.f32.partialorder %v712, 0.0
      %vm729 = vcmp.ge.f32.partialorder %v713, 0.0
      %vm730 = vcmp.ge.f32.partialorder %v714, 0.0
      %vm731 = vcmp.ge.f32.partialorder %v715, 0.0
      %vm732 = vcmp.ge.f32.partialorder %v716, 0.0
      %vm733 = vcmp.ge.f32.partialorder %v717, 0.0
      %vm734 = vcmp.ge.f32.partialorder %v718, 0.0
      %vm735 = vcmp.ge.f32.partialorder %v719, 0.0
      %v736 = vmul.f32 %v704, 0.1
      %v737 = vmul.f32 %v705, 0.1
      %v738 = vmul.f32 %v706, 0.1
      %v739 = vmul.f32 %v707, 0.1
      %v740 = vmul.f32 %v708, 0.1
      %v741 = vmul.f32 %v709, 0.1
      %v742 = vmul.f32 %v710, 0.1
      %v743 = vmul.f32 %v711, 0.1
      %v744 = vmul.f32 %v712, 0.1
      %v745 = vmul.f32 %v713, 0.1
      %v746 = vmul.f32 %v714, 0.1
      %v747 = vmul.f32 %v715, 0.1
      %v748 = vmul.f32 %v716, 0.1
      %v749 = vmul.f32 %v717, 0.1
      %v750 = vmul.f32 %v718, 0.1
      %v751 = vmul.f32 %v719, 0.1
      %v752 = vsel %vm720, %v704, %v736
      %v753 = vsel %vm721, %v705, %v737
      %v754 = vsel %vm722, %v706, %v738
      %v755 = vsel %vm723, %v707, %v739
      %v756 = vsel %vm724, %v708, %v740
      %v757 = vsel %vm725, %v709, %v741
      %v758 = vsel %vm726, %v710, %v742
      %v759 = vsel %vm727, %v711, %v743
      %v760 = vsel %vm728, %v712, %v744
      %v761 = vsel %vm729, %v713, %v745
      %v762 = vsel %vm730, %v714, %v746
      %v763 = vsel %vm731, %v715, %v747
      %v764 = vsel %vm732, %v716, %v748
      %v765 = vsel %vm733, %v717, %v749
      %v766 = vsel %vm734, %v718, %v750
      %v767 = vsel %vm735, %v719, %v751
      %v768 = vpack.c.bf16 %v753, %v752
      %v769 = vpack.c.bf16 %v755, %v754
      %v770 = vpack.c.bf16 %v757, %v756
      %v771 = vpack.c.bf16 %v759, %v758
      %v772 = vpack.c.bf16 %v761, %v760
      %v773 = vpack.c.bf16 %v763, %v762
      %v774 = vpack.c.bf16 %v765, %v764
      %v775 = vpack.c.bf16 %v767, %v766
      %784 = vrot.lane.b32.xlu0 %v559, 4
      %v785 = vpop.permute.xlu0 %784
      %786 = vrot.lane.b32.xlu0 %v560, 4
      %v787 = vpop.permute.xlu0 %786
      %788 = vrot.lane.b32.xlu0 %v561, 4
      %v789 = vpop.permute.xlu0 %788
      %790 = vrot.lane.b32.xlu0 %v562, 4
      %v791 = vpop.permute.xlu0 %790
      %792 = vrot.lane.b32.xlu0 %v563, 4
      %v793 = vpop.permute.xlu0 %792
      %794 = vrot.lane.b32.xlu0 %v564, 4
      %v795 = vpop.permute.xlu0 %794
      %796 = vrot.lane.b32.xlu0 %v565, 4
      %v797 = vpop.permute.xlu0 %796
      %798 = vrot.lane.b32.xlu0 %v566, 4
      %v799 = vpop.permute.xlu0 %798
      %v801 = vshrl.u32 %v442, 16
      %v803 = vshll.u32 %v442, 16
      %v805 = vrot.slane %v803, 1
      %v806 = vor.u32 %v801, %v805
      %v808 = vshrl.u32 %v443, 16
      %v810 = vshll.u32 %v443, 16
      %v812 = vrot.slane %v810, 1
      %v813 = vor.u32 %v808, %v812
      %v815 = vshrl.u32 %v444, 16
      %v817 = vshll.u32 %v444, 16
      %v819 = vrot.slane %v817, 1
      %v820 = vor.u32 %v815, %v819
      %v822 = vshrl.u32 %v445, 16
      %v824 = vshll.u32 %v445, 16
      %v826 = vrot.slane %v824, 1
      %v827 = vor.u32 %v822, %v826
      %v829 = vshrl.u32 %v446, 16
      %v831 = vshll.u32 %v446, 16
      %v833 = vrot.slane %v831, 1
      %v834 = vor.u32 %v829, %v833
      %v836 = vshrl.u32 %v447, 16
      %v838 = vshll.u32 %v447, 16
      %v840 = vrot.slane %v838, 1
      %v841 = vor.u32 %v836, %v840
      %v843 = vshrl.u32 %v448, 16
      %v845 = vshll.u32 %v448, 16
      %v847 = vrot.slane %v845, 1
      %v848 = vor.u32 %v843, %v847
      %v850 = vshrl.u32 %v449, 16
      %v852 = vshll.u32 %v449, 16
      %v854 = vrot.slane %v852, 1
      %v855 = vor.u32 %v850, %v854
      %856 = vrot.lane.b32.xlu0 %v806, 8
      %v857 = vpop.permute.xlu0 %856
      %858 = vrot.lane.b32.xlu0 %v813, 8
      %v859 = vpop.permute.xlu0 %858
      %860 = vrot.lane.b32.xlu0 %v820, 8
      %v861 = vpop.permute.xlu0 %860
      %862 = vrot.lane.b32.xlu0 %v827, 8
      %v863 = vpop.permute.xlu0 %862
      %864 = vrot.lane.b32.xlu0 %v834, 8
      %v865 = vpop.permute.xlu0 %864
      %866 = vrot.lane.b32.xlu0 %v841, 8
      %v867 = vpop.permute.xlu0 %866
      %868 = vrot.lane.b32.xlu0 %v848, 8
      %v869 = vpop.permute.xlu0 %868
      %870 = vrot.lane.b32.xlu0 %v855, 8
      %v871 = vpop.permute.xlu0 %870
      %vm872 = vcmask 31744
      %v874 = vsel %vm872, %v442, %v785
      %v876 = vsel %vm872, %v443, %v787
      %v878 = vsel %vm872, %v444, %v789
      %v880 = vsel %vm872, %v445, %v791
      %v882 = vsel %vm872, %v446, %v793
      %v884 = vsel %vm872, %v447, %v795
      %v886 = vsel %vm872, %v448, %v797
      %v888 = vsel %vm872, %v449, %v799
      %vm889 = vcmask 64512
      %v891 = vsel %vm889, %v874, %v857
      %v893 = vsel %vm889, %v876, %v859
      %v895 = vsel %vm889, %v878, %v861
      %v897 = vsel %vm889, %v880, %v863
      %v899 = vsel %vm889, %v882, %v865
      %v901 = vsel %vm889, %v884, %v867
      %v903 = vsel %vm889, %v886, %v869
      %v905 = vsel %vm889, %v888, %v871
      %v906 = vld [vmem:[%s1] sm:$0xf]
      %v907 = vld [vmem:[%s1 + $0x4] sm:$0x3]
      %916 = vrot.lane.b32.xlu0 %v768, 4
      %v917 = vpop.permute.xlu0 %916
      %918 = vrot.lane.b32.xlu0 %v769, 4
      %v919 = vpop.permute.xlu0 %918
      %920 = vrot.lane.b32.xlu0 %v770, 4
      %v921 = vpop.permute.xlu0 %920
      %922 = vrot.lane.b32.xlu0 %v771, 4
      %v923 = vpop.permute.xlu0 %922
      %924 = vrot.lane.b32.xlu0 %v772, 4
      %v925 = vpop.permute.xlu0 %924
      %926 = vrot.lane.b32.xlu0 %v773, 4
      %v927 = vpop.permute.xlu0 %926
      %928 = vrot.lane.b32.xlu0 %v774, 4
      %v929 = vpop.permute.xlu0 %928
      %930 = vrot.lane.b32.xlu0 %v775, 4
      %v931 = vpop.permute.xlu0 %930
      %v933 = vshrl.u32 %v664, 16
      %v935 = vshll.u32 %v664, 16
      %v937 = vrot.slane %v935, 1
      %v938 = vor.u32 %v933, %v937
      %v940 = vshrl.u32 %v665, 16
      %v942 = vshll.u32 %v665, 16
      %v944 = vrot.slane %v942, 1
      %v945 = vor.u32 %v940, %v944
      %v947 = vshrl.u32 %v666, 16
      %v949 = vshll.u32 %v666, 16
      %v951 = vrot.slane %v949, 1
      %v952 = vor.u32 %v947, %v951
      %v954 = vshrl.u32 %v667, 16
      %v956 = vshll.u32 %v667, 16
      %v958 = vrot.slane %v956, 1
      %v959 = vor.u32 %v954, %v958
      %v961 = vshrl.u32 %v668, 16
      %v963 = vshll.u32 %v668, 16
      %v965 = vrot.slane %v963, 1
      %v966 = vor.u32 %v961, %v965
      %v968 = vshrl.u32 %v669, 16
      %v970 = vshll.u32 %v669, 16
      %v972 = vrot.slane %v970, 1
      %v973 = vor.u32 %v968, %v972
      %v975 = vshrl.u32 %v670, 16
      %v977 = vshll.u32 %v670, 16
      %v979 = vrot.slane %v977, 1
      %v980 = vor.u32 %v975, %v979
      %v982 = vshrl.u32 %v671, 16
      %v984 = vshll.u32 %v671, 16
      %v986 = vrot.slane %v984, 1
      %v987 = vor.u32 %v982, %v986
      %988 = vrot.lane.b32.xlu0 %v938, 8
      %v989 = vpop.permute.xlu0 %988
      %990 = vrot.lane.b32.xlu0 %v945, 8
      %v991 = vpop.permute.xlu0 %990
      %992 = vrot.lane.b32.xlu0 %v952, 8
      %v993 = vpop.permute.xlu0 %992
      %994 = vrot.lane.b32.xlu0 %v959, 8
      %v995 = vpop.permute.xlu0 %994
      %996 = vrot.lane.b32.xlu0 %v966, 8
      %v997 = vpop.permute.xlu0 %996
      %998 = vrot.lane.b32.xlu0 %v973, 8
      %v999 = vpop.permute.xlu0 %998
      %1000 = vrot.lane.b32.xlu0 %v980, 8
      %v1001 = vpop.permute.xlu0 %1000
      %1002 = vrot.lane.b32.xlu0 %v987, 8
      %v1003 = vpop.permute.xlu0 %1002
      %v1005 = vsel %vm872, %v664, %v917
      %v1007 = vsel %vm872, %v665, %v919
      %v1009 = vsel %vm872, %v666, %v921
      %v1011 = vsel %vm872, %v667, %v923
      %v1013 = vsel %vm872, %v668, %v925
      %v1015 = vsel %vm872, %v669, %v927
      %v1017 = vsel %vm872, %v670, %v929
      %v1019 = vsel %vm872, %v671, %v931
      %v1021 = vsel %vm889, %v1005, %v989
      %v1023 = vsel %vm889, %v1007, %v991
      %v1025 = vsel %vm889, %v1009, %v993
      %v1027 = vsel %vm889, %v1011, %v995
      %v1029 = vsel %vm889, %v1013, %v997
      %v1031 = vsel %vm889, %v1015, %v999
      %v1033 = vsel %vm889, %v1017, %v1001
      %v1035 = vsel %vm889, %v1019, %v1003
      %s1036 = scalar_lea.vmem %s1, 8
      %v1037 = vld [vmem:[%s1036] sm:$0xf]
      %v1038 = vld [vmem:[%s1036 + $0x4] sm:$0x3]
      %v1047 = vunpack.c.l.b16 %v1021
      %v1048 = vunpack.c.l.b16 %v1023
      %v1049 = vunpack.c.l.b16 %v1025
      %v1050 = vunpack.c.l.b16 %v1027
      %v1051 = vunpack.c.l.b16 %v1029
      %v1052 = vunpack.c.l.b16 %v1031
      %v1053 = vunpack.c.l.b16 %v1033
      %v1054 = vunpack.c.l.b16 %v1035
      %v1055 = vpack.c.b16 %v1048, %v1047
      %v1056 = vpack.c.b16 %v1050, %v1049
      %v1057 = vpack.c.b16 %v1052, %v1051
      %v1058 = vpack.c.b16 %v1054, %v1053
      %v1061 = vunpack.c.l.b16 %v1037
      %v1062 = vunpack.c.l.b16 %v1038
      %v1063 = vpack.c.b16 %v1062, %v1061
      %vm1064 = vcmask 97280
      %v1066 = vsel %vm1064, %v1055, 0
      %v1069 = vsel %vm1064, %v1056, 0
      %v1072 = vsel %vm1064, %v1057, 0
      %v1075 = vsel %vm1064, %v1058, 0
      %vm1077 = vcmask 1045504
      %v1079 = vsel %vm1077, %v1063, 0
      %1081 = vmatprep.subr.bf16.mxu0 0
      %1082 = vmatpush1.bf16.msra.mxu0 %v1079
      %1083 = vmatprep.subr.bf16.mxu0 0
      %1084 = vmatpush1.bf16.msra.mxu0 0
      %1085 = vmatprep.subr.bf16.mxu0 0
      %1086 = vmatpush1.bf16.msra.mxu0 0
      %1087 = vmatprep.subr.bf16.mxu0 0
      %1088 = vmatpush1.bf16.msra.mxu0 0
      %1089 = vmatprep.subr.bf16.mxu0 0
      %1090 = vmatpush1.bf16.msra.mxu0 0
      %1091 = vmatprep.subr.bf16.mxu0 0
      %1092 = vmatpush1.bf16.msra.mxu0 0
      %1093 = vmatprep.subr.bf16.mxu0 0
      %1094 = vmatpush1.bf16.msra.mxu0 0
      %1095 = vmatprep.subr.bf16.mxu0 0
      %1096 = vmatpush1.bf16.msra.mxu0 0
      %1097 = vmatprep.subr.bf16.mxu0 0
      %1098 = vmatpush1.bf16.msra.mxu0 0
      %1099 = vmatprep.subr.bf16.mxu0 0
      %1100 = vmatpush1.bf16.msra.mxu0 0
      %1101 = vmatprep.subr.bf16.mxu0 0
      %1102 = vmatpush1.bf16.msra.mxu0 0
      %1103 = vmatprep.subr.bf16.mxu0 0
      %1104 = vmatpush1.bf16.msra.mxu0 0
      %1105 = vmatprep.subr.bf16.mxu0 0
      %1106 = vmatpush1.bf16.msra.mxu0 0
      %1107 = vmatprep.subr.bf16.mxu0 0
      %1108 = vmatpush1.bf16.msra.mxu0 0
      %1109 = vmatprep.subr.bf16.mxu0 0
      %1110 = vmatpush1.bf16.msra.mxu0 0
      %1111 = vmatprep.subr.bf16.mxu0 0
      %1112 = vmatpush1.bf16.msra.mxu0 0
      %1113 = vmatprep.mubr.bf16.mxu0 0
      %1114 = vmatmul.mubr.bf16.gmra.mrb[0].mxu0 %v1066
      %v1115 = vpop.f32.mrb[0].mxu0
      %v1116 = vadd.f32 0.0, %v1115
      %v1117 = vpop.f32.mrb[0].mxu0
      %v1118 = vpop.f32.mrb[0].mxu0
      %v1119 = vadd.f32 0.0, %v1118
      %v1120 = vpop.f32.mrb[0].mxu0
      %1121 = vmatprep.mubr.bf16.mxu0 0
      %1122 = vmatmul.mubr.bf16.gmra.mrb[0].mxu0 %v1069
      %v1123 = vpop.f32.mrb[0].mxu0
      %v1124 = vadd.f32 0.0, %v1123
      %v1125 = vpop.f32.mrb[0].mxu0
      %v1126 = vpop.f32.mrb[0].mxu0
      %v1127 = vadd.f32 0.0, %v1126
      %v1128 = vpop.f32.mrb[0].mxu0
      %1129 = vmatprep.mubr.bf16.mxu0 0
      %1130 = vmatmul.mubr.bf16.gmra.mrb[0].mxu0 %v1072
      %v1131 = vpop.f32.mrb[0].mxu0
      %v1132 = vadd.f32 0.0, %v1131
      %v1133 = vpop.f32.mrb[0].mxu0
      %v1134 = vpop.f32.mrb[0].mxu0
      %v1135 = vadd.f32 0.0, %v1134
      %v1136 = vpop.f32.mrb[0].mxu0
      %1137 = vmatprep.mubr.bf16.mxu0 0
      %1138 = vmatmul.mubr.bf16.gmra.mrb[0].mxu0 %v1075
      %v1139 = vpop.f32.mrb[0].mxu0
      %v1140 = vadd.f32 0.0, %v1139
      %v1141 = vpop.f32.mrb[0].mxu0
      %v1142 = vpop.f32.mrb[0].mxu0
      %v1143 = vadd.f32 0.0, %v1142
      %v1144 = vpop.f32.mrb[0].mxu0
      %1145 = vdwg.mxu0
      %v1154 = vunpack.c.l.b16 %v891
      %v1155 = vunpack.c.l.b16 %v893
      %v1156 = vunpack.c.l.b16 %v895
      %v1157 = vunpack.c.l.b16 %v897
      %v1158 = vunpack.c.l.b16 %v899
      %v1159 = vunpack.c.l.b16 %v901
      %v1160 = vunpack.c.l.b16 %v903
      %v1161 = vunpack.c.l.b16 %v905
      %v1162 = vpack.c.b16 %v1155, %v1154
      %v1163 = vpack.c.b16 %v1157, %v1156
      %v1164 = vpack.c.b16 %v1159, %v1158
      %v1165 = vpack.c.b16 %v1161, %v1160
      %v1168 = vunpack.c.l.b16 %v906
      %v1169 = vunpack.c.l.b16 %v907
      %v1170 = vpack.c.b16 %v1169, %v1168
      %v1172 = vsel %vm1064, %v1162, 0
      %v1175 = vsel %vm1064, %v1163, 0
      %v1178 = vsel %vm1064, %v1164, 0
      %v1181 = vsel %vm1064, %v1165, 0
      %v1184 = vsel %vm1077, %v1170, 0
      %1186 = vmatprep.subr.bf16.mxu0 0
      %1187 = vmatpush1.bf16.msra.mxu0 %v1184
      %1188 = vmatprep.subr.bf16.mxu0 0
      %1189 = vmatpush1.bf16.msra.mxu0 0
      %1190 = vmatprep.subr.bf16.mxu0 0
      %1191 = vmatpush1.bf16.msra.mxu0 0
      %1192 = vmatprep.subr.bf16.mxu0 0
      %1193 = vmatpush1.bf16.msra.mxu0 0
      %1194 = vmatprep.subr.bf16.mxu0 0
      %1195 = vmatpush1.bf16.msra.mxu0 0
      %1196 = vmatprep.subr.bf16.mxu0 0
      %1197 = vmatpush1.bf16.msra.mxu0 0
      %1198 = vmatprep.subr.bf16.mxu0 0
      %1199 = vmatpush1.bf16.msra.mxu0 0
      %1200 = vmatprep.subr.bf16.mxu0 0
      %1201 = vmatpush1.bf16.msra.mxu0 0
      %1202 = vmatprep.subr.bf16.mxu0 0
      %1203 = vmatpush1.bf16.msra.mxu0 0
      %1204 = vmatprep.subr.bf16.mxu0 0
      %1205 = vmatpush1.bf16.msra.mxu0 0
      %1206 = vmatprep.subr.bf16.mxu0 0
      %1207 = vmatpush1.bf16.msra.mxu0 0
      %1208 = vmatprep.subr.bf16.mxu0 0
      %1209 = vmatpush1.bf16.msra.mxu0 0
      %1210 = vmatprep.subr.bf16.mxu0 0
      %1211 = vmatpush1.bf16.msra.mxu0 0
      %1212 = vmatprep.subr.bf16.mxu0 0
      %1213 = vmatpush1.bf16.msra.mxu0 0
      %1214 = vmatprep.subr.bf16.mxu0 0
      %1215 = vmatpush1.bf16.msra.mxu0 0
      %1216 = vmatprep.subr.bf16.mxu0 0
      %1217 = vmatpush1.bf16.msra.mxu0 0
      %1218 = vmatprep.mubr.bf16.mxu0 0
      %1219 = vmatmul.mubr.bf16.gmra.mrb[0].mxu0 %v1172
      %v1220 = vpop.f32.mrb[0].mxu0
      %v1221 = vadd.f32 %v1116, %v1220
      %v1222 = vpop.f32.mrb[0].mxu0
      %v1223 = vpop.f32.mrb[0].mxu0
      %v1224 = vadd.f32 %v1119, %v1223
      %v1225 = vpop.f32.mrb[0].mxu0
      %1226 = vmatprep.mubr.bf16.mxu0 0
      %1227 = vmatmul.mubr.bf16.gmra.mrb[0].mxu0 %v1175
      %v1228 = vpop.f32.mrb[0].mxu0
      %v1229 = vadd.f32 %v1124, %v1228
      %v1230 = vpop.f32.mrb[0].mxu0
      %v1231 = vpop.f32.mrb[0].mxu0
      %v1232 = vadd.f32 %v1127, %v1231
      %v1233 = vpop.f32.mrb[0].mxu0
      %1234 = vmatprep.mubr.bf16.mxu0 0
      %1235 = vmatmul.mubr.bf16.gmra.mrb[0].mxu0 %v1178
      %v1236 = vpop.f32.mrb[0].mxu0
      %v1237 = vadd.f32 %v1132, %v1236
      %v1238 = vpop.f32.mrb[0].mxu0
      %v1239 = vpop.f32.mrb[0].mxu0
      %v1240 = vadd.f32 %v1135, %v1239
      %v1241 = vpop.f32.mrb[0].mxu0
      %1242 = vmatprep.mubr.bf16.mxu0 0
      %1243 = vmatmul.mubr.bf16.gmra.mrb[0].mxu0 %v1181
      %v1244 = vpop.f32.mrb[0].mxu0
      %v1245 = vadd.f32 %v1140, %v1244
      %v1246 = vpop.f32.mrb[0].mxu0
      %v1247 = vpop.f32.mrb[0].mxu0
      %v1248 = vadd.f32 %v1143, %v1247
      %v1249 = vpop.f32.mrb[0].mxu0
      %1250 = vdwg.mxu0
      %1252 = vrot.lane.b32.xlu0 %v567, 4
      %v1253 = vpop.permute.xlu0 %1252
      %v1255 = vshrl.u32 %v450, 16
      %v1257 = vshll.u32 %v450, 16
      %v1259 = vrot.slane %v1257, 1
      %v1260 = vor.u32 %v1255, %v1259
      %1261 = vrot.lane.b32.xlu0 %v1260, 8
      %v1262 = vpop.permute.xlu0 %1261
      %v1264 = vsel %vm872, %v450, %v1253
      %v1266 = vsel %vm889, %v1264, %v1262
      %s1267 = scalar_lea.vmem %s1, 16
      %v1268 = vld [vmem:[%s1267] sm:$0xf]
      %v1269 = vld [vmem:[%s1267 + $0x4] sm:$0x3]
      %v1271 = vunpack.c.l.b16 %v1266
      %v1272 = vpack.c.b16 %v1156, %v1155
      %v1273 = vpack.c.b16 %v1158, %v1157
      %v1274 = vpack.c.b16 %v1160, %v1159
      %v1275 = vpack.c.b16 %v1271, %v1161
      %v1278 = vunpack.c.l.b16 %v1268
      %v1279 = vunpack.c.l.b16 %v1269
      %v1280 = vpack.c.b16 %v1279, %v1278
      %v1282 = vsel %vm1064, %v1272, 0
      %v1285 = vsel %vm1064, %v1273, 0
      %v1288 = vsel %vm1064, %v1274, 0
      %v1291 = vsel %vm1064, %v1275, 0
      %v1294 = vsel %vm1077, %v1280, 0
      %1296 = vmatprep.subr.bf16.mxu0 0
      %1297 = vmatpush1.bf16.msra.mxu0 %v1294
      %1298 = vmatprep.subr.bf16.mxu0 0
      %1299 = vmatpush1.bf16.msra.mxu0 0
      %1300 = vmatprep.subr.bf16.mxu0 0
      %1301 = vmatpush1.bf16.msra.mxu0 0
      %1302 = vmatprep.subr.bf16.mxu0 0
      %1303 = vmatpush1.bf16.msra.mxu0 0
      %1304 = vmatprep.subr.bf16.mxu0 0
      %1305 = vmatpush1.bf16.msra.mxu0 0
      %1306 = vmatprep.subr.bf16.mxu0 0
      %1307 = vmatpush1.bf16.msra.mxu0 0
      %1308 = vmatprep.subr.bf16.mxu0 0
      %1309 = vmatpush1.bf16.msra.mxu0 0
      %1310 = vmatprep.subr.bf16.mxu0 0
      %1311 = vmatpush1.bf16.msra.mxu0 0
      %1312 = vmatprep.subr.bf16.mxu0 0
      %1313 = vmatpush1.bf16.msra.mxu0 0
      %1314 = vmatprep.subr.bf16.mxu0 0
      %1315 = vmatpush1.bf16.msra.mxu0 0
      %1316 = vmatprep.subr.bf16.mxu0 0
      %1317 = vmatpush1.bf16.msra.mxu0 0
      %1318 = vmatprep.subr.bf16.mxu0 0
      %1319 = vmatpush1.bf16.msra.mxu0 0
      %1320 = vmatprep.subr.bf16.mxu0 0
      %1321 = vmatpush1.bf16.msra.mxu0 0
      %1322 = vmatprep.subr.bf16.mxu0 0
      %1323 = vmatpush1.bf16.msra.mxu0 0
      %1324 = vmatprep.subr.bf16.mxu0 0
      %1325 = vmatpush1.bf16.msra.mxu0 0
      %1326 = vmatprep.subr.bf16.mxu0 0
      %1327 = vmatpush1.bf16.msra.mxu0 0
      %1328 = vmatprep.mubr.bf16.mxu0 0
      %1329 = vmatmul.mubr.bf16.gmra.mrb[0].mxu0 %v1282
      %v1330 = vpop.f32.mrb[0].mxu0
      %v1331 = vadd.f32 0.0, %v1330
      %v1332 = vpop.f32.mrb[0].mxu0
      %v1333 = vpop.f32.mrb[0].mxu0
      %v1334 = vadd.f32 0.0, %v1333
      %v1335 = vpop.f32.mrb[0].mxu0
      %1336 = vmatprep.mubr.bf16.mxu0 0
      %1337 = vmatmul.mubr.bf16.gmra.mrb[0].mxu0 %v1285
      %v1338 = vpop.f32.mrb[0].mxu0
      %v1339 = vadd.f32 0.0, %v1338
      %v1340 = vpop.f32.mrb[0].mxu0
      %v1341 = vpop.f32.mrb[0].mxu0
      %v1342 = vadd.f32 0.0, %v1341
      %v1343 = vpop.f32.mrb[0].mxu0
      %1344 = vmatprep.mubr.bf16.mxu0 0
      %1345 = vmatmul.mubr.bf16.gmra.mrb[0].mxu0 %v1288
      %v1346 = vpop.f32.mrb[0].mxu0
      %v1347 = vadd.f32 0.0, %v1346
      %v1348 = vpop.f32.mrb[0].mxu0
      %v1349 = vpop.f32.mrb[0].mxu0
      %v1350 = vadd.f32 0.0, %v1349
      %v1351 = vpop.f32.mrb[0].mxu0
      %1352 = vmatprep.mubr.bf16.mxu0 0
      %1353 = vmatmul.mubr.bf16.gmra.mrb[0].mxu0 %v1291
      %v1354 = vpop.f32.mrb[0].mxu0
      %v1355 = vadd.f32 0.0, %v1354
      %v1356 = vpop.f32.mrb[0].mxu0
      %v1357 = vpop.f32.mrb[0].mxu0
      %v1358 = vadd.f32 0.0, %v1357
      %v1359 = vpop.f32.mrb[0].mxu0
      %1360 = vdwg.mxu0
      %v1361 = vadd.f32 %v1221, %v1331
      %v1362 = vadd.f32 %v1224, %v1334
      %v1363 = vadd.f32 %v1229, %v1339
      %v1364 = vadd.f32 %v1232, %v1342
      %v1365 = vadd.f32 %v1237, %v1347
      %v1366 = vadd.f32 %v1240, %v1350
      %v1367 = vadd.f32 %v1245, %v1355
      %v1368 = vadd.f32 %v1248, %v1358
      %v1369 = vld [vmem:[%s5] sm:$0x1]
      %v1370 = vlaneseq
      %v1371 = vshrl.u32 %v1370, 7
      %v1372 = vsub.s32 0, %v1371
      %v1373 = vrot.slane %v1369, %v1372
      %v1374 = vadd.f32 %v1361, %v1373
      %v1375 = vadd.f32 %v1362, %v1373
      %v1376 = vadd.f32 %v1363, %v1373
      %v1377 = vadd.f32 %v1364, %v1373
      %v1378 = vadd.f32 %v1365, %v1373
      %v1379 = vadd.f32 %v1366, %v1373
      %v1380 = vadd.f32 %v1367, %v1373
      %v1381 = vadd.f32 %v1368, %v1373
      %vm1382 = vcmp.ge.f32.partialorder %v1374, 0.0
      %vm1383 = vcmp.ge.f32.partialorder %v1375, 0.0
      %vm1384 = vcmp.ge.f32.partialorder %v1376, 0.0
      %vm1385 = vcmp.ge.f32.partialorder %v1377, 0.0
      %vm1386 = vcmp.ge.f32.partialorder %v1378, 0.0
      %vm1387 = vcmp.ge.f32.partialorder %v1379, 0.0
      %vm1388 = vcmp.ge.f32.partialorder %v1380, 0.0
      %vm1389 = vcmp.ge.f32.partialorder %v1381, 0.0
      %v1390 = vmul.f32 %v1374, 0.1
      %v1391 = vmul.f32 %v1375, 0.1
      %v1392 = vmul.f32 %v1376, 0.1
      %v1393 = vmul.f32 %v1377, 0.1
      %v1394 = vmul.f32 %v1378, 0.1
      %v1395 = vmul.f32 %v1379, 0.1
      %v1396 = vmul.f32 %v1380, 0.1
      %v1397 = vmul.f32 %v1381, 0.1
      %v1398 = vsel %vm1382, %v1374, %v1390
      %v1399 = vsel %vm1383, %v1375, %v1391
      %v1400 = vsel %vm1384, %v1376, %v1392
      %v1401 = vsel %vm1385, %v1377, %v1393
      %v1402 = vsel %vm1386, %v1378, %v1394
      %v1403 = vsel %vm1387, %v1379, %v1395
      %v1404 = vsel %vm1388, %v1380, %v1396
      %v1405 = vsel %vm1389, %v1381, %v1397
      %v1406 = vpack.c.bf16 %v1399, %v1398
      %v1407 = vpack.c.bf16 %v1401, %v1400
      %v1408 = vpack.c.bf16 %v1403, %v1402
      %v1409 = vpack.c.bf16 %v1405, %v1404
      %vm1410 = vcmask 60416
      %1411 = vst.msk [vmem:[#allocation2] sm:$0xf] %vm1410, 0
      %vm1412 = vcmask 57344
      %1413 = vst.msk [vmem:[#allocation2 + $0x4] sm:$0x1] %vm1412, 0
      %s1414 = scalar_lea.vmem [#allocation2], 72
      %1415 = vst.msk [vmem:[%s1414] sm:$0xf] %vm1410, 0
      %1416 = vst.msk [vmem:[%s1414 + $0x4] sm:$0x1] %vm1412, 0
      %vm1417 = vcmask 57344
      %vm1418 = vsmask.f32 256
      %vm1419 = vmand %vm1417, %vm1418
      %v1420 = vld [vmem:[#allocation2] sm:$0x1]
      %v1421 = vsel %vm1419, 0, %v1420
      %1422 = vst [vmem:[#allocation2] sm:$0x1] %v1421
      %v1423 = vld [vmem:[#allocation2 + $0x8] sm:$0x1]
      %v1424 = vsel %vm1419, 0, %v1423
      %1425 = vst [vmem:[#allocation2 + $0x8] sm:$0x1] %v1424
      %v1426 = vld [vmem:[#allocation2 + $0x10] sm:$0x1]
      %v1427 = vsel %vm1419, 0, %v1426
      %1428 = vst [vmem:[#allocation2 + $0x10] sm:$0x1] %v1427
      %v1429 = vld [vmem:[#allocation2 + $0x18] sm:$0x1]
      %v1430 = vsel %vm1419, 0, %v1429
      %1431 = vst [vmem:[#allocation2 + $0x18] sm:$0x1] %v1430
      %v1432 = vld [vmem:[#allocation2 + $0x20] sm:$0x1]
      %v1433 = vsel %vm1419, 0, %v1432
      %1434 = vst [vmem:[#allocation2 + $0x20] sm:$0x1] %v1433
      %v1435 = vld [vmem:[#allocation2 + $0x28] sm:$0x1]
      %v1436 = vsel %vm1419, 0, %v1435
      %1437 = vst [vmem:[#allocation2 + $0x28] sm:$0x1] %v1436
      %v1438 = vld [vmem:[#allocation2 + $0x30] sm:$0x1]
      %v1439 = vsel %vm1419, 0, %v1438
      %1440 = vst [vmem:[#allocation2 + $0x30] sm:$0x1] %v1439
      %v1441 = vld [vmem:[#allocation2 + $0x38] sm:$0x1]
      %v1442 = vsel %vm1419, 0, %v1441
      %1443 = vst [vmem:[#allocation2 + $0x38] sm:$0x1] %v1442
      %v1444 = vld [vmem:[#allocation2 + $0x40] sm:$0x1]
      %v1445 = vsel %vm1419, 0, %v1444
      %1446 = vst [vmem:[#allocation2 + $0x40] sm:$0x1] %v1445
      %v1447 = vld [vmem:[#allocation2 + $0x48] sm:$0x1]
      %v1448 = vsel %vm1419, 0, %v1447
      %1449 = vst [vmem:[#allocation2 + $0x48] sm:$0x1] %v1448
      %vm1450 = vsmask.f32 7938
      %vm1451 = vmand %vm1417, %vm1450
      %v1452 = vld [vmem:[#allocation2 + $0x4] sm:$0x1]
      %v1453 = vsel %vm1451, 0, %v1452
      %1454 = vst [vmem:[#allocation2 + $0x4] sm:$0x1] %v1453
      %v1455 = vld [vmem:[#allocation2 + $0xc] sm:$0x1]
      %v1456 = vsel %vm1451, 0, %v1455
      %1457 = vst [vmem:[#allocation2 + $0xc] sm:$0x1] %v1456
      %v1458 = vld [vmem:[#allocation2 + $0x14] sm:$0x1]
      %v1459 = vsel %vm1451, 0, %v1458
      %1460 = vst [vmem:[#allocation2 + $0x14] sm:$0x1] %v1459
      %v1461 = vld [vmem:[#allocation2 + $0x1c] sm:$0x1]
      %v1462 = vsel %vm1451, 0, %v1461
      %1463 = vst [vmem:[#allocation2 + $0x1c] sm:$0x1] %v1462
      %v1464 = vld [vmem:[#allocation2 + $0x24] sm:$0x1]
      %v1465 = vsel %vm1451, 0, %v1464
      %1466 = vst [vmem:[#allocation2 + $0x24] sm:$0x1] %v1465
      %v1467 = vld [vmem:[#allocation2 + $0x2c] sm:$0x1]
      %v1468 = vsel %vm1451, 0, %v1467
      %1469 = vst [vmem:[#allocation2 + $0x2c] sm:$0x1] %v1468
      %v1470 = vld [vmem:[#allocation2 + $0x34] sm:$0x1]
      %v1471 = vsel %vm1451, 0, %v1470
      %1472 = vst [vmem:[#allocation2 + $0x34] sm:$0x1] %v1471
      %v1473 = vld [vmem:[#allocation2 + $0x3c] sm:$0x1]
      %v1474 = vsel %vm1451, 0, %v1473
      %1475 = vst [vmem:[#allocation2 + $0x3c] sm:$0x1] %v1474
      %v1476 = vld [vmem:[#allocation2 + $0x44] sm:$0x1]
      %v1477 = vsel %vm1451, 0, %v1476
      %1478 = vst [vmem:[#allocation2 + $0x44] sm:$0x1] %v1477
      %v1479 = vld [vmem:[#allocation2 + $0x4c] sm:$0x1]
      %v1480 = vsel %vm1451, 0, %v1479
      %1481 = vst [vmem:[#allocation2 + $0x4c] sm:$0x1] %v1480
      %v1486 = vunpack.c.l.b16 %v1406
      %v1487 = vunpack.c.h.b16 %v1406
      %v1488 = vunpack.c.l.b16 %v1407
      %v1489 = vunpack.c.h.b16 %v1407
      %v1490 = vunpack.c.l.b16 %v1408
      %v1491 = vunpack.c.h.b16 %v1408
      %v1492 = vunpack.c.l.b16 %v1409
      %v1493 = vunpack.c.h.b16 %v1409
      %v1494 = vpack.c.b16 %v1486, %v1486
      %v1495 = vpack.c.b16 %v1487, %v1487
      %v1496 = vpack.c.b16 %v1488, %v1488
      %v1497 = vpack.c.b16 %v1489, %v1489
      %v1498 = vpack.c.b16 %v1490, %v1490
      %v1499 = vpack.c.b16 %v1491, %v1491
      %v1500 = vpack.c.b16 %v1492, %v1492
      %v1501 = vpack.c.b16 %v1493, %v1493
      %v1503 = vshrl.u32 %v1494, 16
      %v1505 = vrot.slane %v1503, 7
      %v1506 = vshll.u32 %v1494, 16
      %v1508 = vor.u32 %v1505, %v1506
      %v1509 = vrot.slane %v1505, 4
      %v1511 = vshrl.u32 %v1495, 16
      %v1513 = vrot.slane %v1511, 7
      %v1514 = vshll.u32 %v1495, 16
      %v1516 = vor.u32 %v1513, %v1514
      %v1517 = vrot.slane %v1513, 4
      %v1519 = vshrl.u32 %v1496, 16
      %v1521 = vrot.slane %v1519, 7
      %v1522 = vshll.u32 %v1496, 16
      %v1524 = vor.u32 %v1521, %v1522
      %v1525 = vrot.slane %v1521, 4
      %v1527 = vshrl.u32 %v1497, 16
      %v1529 = vrot.slane %v1527, 7
      %v1530 = vshll.u32 %v1497, 16
      %v1532 = vor.u32 %v1529, %v1530
      %v1533 = vrot.slane %v1529, 4
      %v1535 = vshrl.u32 %v1498, 16
      %v1537 = vrot.slane %v1535, 7
      %v1538 = vshll.u32 %v1498, 16
      %v1540 = vor.u32 %v1537, %v1538
      %v1541 = vrot.slane %v1537, 4
      %v1543 = vshrl.u32 %v1499, 16
      %v1545 = vrot.slane %v1543, 7
      %v1546 = vshll.u32 %v1499, 16
      %v1548 = vor.u32 %v1545, %v1546
      %v1549 = vrot.slane %v1545, 4
      %v1551 = vshrl.u32 %v1500, 16
      %v1553 = vrot.slane %v1551, 7
      %v1554 = vshll.u32 %v1500, 16
      %v1556 = vor.u32 %v1553, %v1554
      %v1557 = vrot.slane %v1553, 4
      %v1559 = vshrl.u32 %v1501, 16
      %v1561 = vrot.slane %v1559, 7
      %v1562 = vshll.u32 %v1501, 16
      %v1564 = vor.u32 %v1561, %v1562
      %v1565 = vrot.slane %v1561, 4
      %s1582 = scalar_lea.vmem [#allocation2], 8
      %vm1583 = vcmask 60416
      %vm1584 = vmand %vm1583, %vm1450
      %v1585 = vld [vmem:[%s1582] sm:$0xf]
      %v1586 = vsel %vm1584, %v1508, %v1585
      %1587 = vst [vmem:[%s1582] sm:$0xf] %v1586
      %v1588 = vld [vmem:[%s1582 + $0x4] sm:$0x1]
      %v1589 = vsel %vm1419, %v1509, %v1588
      %1590 = vst [vmem:[%s1582 + $0x4] sm:$0x1] %v1589
      %v1591 = vld [vmem:[%s1582 + $0x8] sm:$0xf]
      %v1592 = vsel %vm1584, %v1516, %v1591
      %1593 = vst [vmem:[%s1582 + $0x8] sm:$0xf] %v1592
      %v1594 = vld [vmem:[%s1582 + $0xc] sm:$0x1]
      %v1595 = vsel %vm1419, %v1517, %v1594
      %1596 = vst [vmem:[%s1582 + $0xc] sm:$0x1] %v1595
      %v1597 = vld [vmem:[%s1582 + $0x10] sm:$0xf]
      %v1598 = vsel %vm1584, %v1524, %v1597
      %1599 = vst [vmem:[%s1582 + $0x10] sm:$0xf] %v1598
      %v1600 = vld [vmem:[%s1582 + $0x14] sm:$0x1]
      %v1601 = vsel %vm1419, %v1525, %v1600
      %1602 = vst [vmem:[%s1582 + $0x14] sm:$0x1] %v1601
      %v1603 = vld [vmem:[%s1582 + $0x18] sm:$0xf]
      %v1604 = vsel %vm1584, %v1532, %v1603
      %1605 = vst [vmem:[%s1582 + $0x18] sm:$0xf] %v1604
      %v1606 = vld [vmem:[%s1582 + $0x1c] sm:$0x1]
      %v1607 = vsel %vm1419, %v1533, %v1606
      %1608 = vst [vmem:[%s1582 + $0x1c] sm:$0x1] %v1607
      %v1609 = vld [vmem:[%s1582 + $0x20] sm:$0xf]
      %v1610 = vsel %vm1584, %v1540, %v1609
      %1611 = vst [vmem:[%s1582 + $0x20] sm:$0xf] %v1610
      %v1612 = vld [vmem:[%s1582 + $0x24] sm:$0x1]
      %v1613 = vsel %vm1419, %v1541, %v1612
      %1614 = vst [vmem:[%s1582 + $0x24] sm:$0x1] %v1613
      %v1615 = vld [vmem:[%s1582 + $0x28] sm:$0xf]
      %v1616 = vsel %vm1584, %v1548, %v1615
      %1617 = vst [vmem:[%s1582 + $0x28] sm:$0xf] %v1616
      %v1618 = vld [vmem:[%s1582 + $0x2c] sm:$0x1]
      %v1619 = vsel %vm1419, %v1549, %v1618
      %1620 = vst [vmem:[%s1582 + $0x2c] sm:$0x1] %v1619
      %v1621 = vld [vmem:[%s1582 + $0x30] sm:$0xf]
      %v1622 = vsel %vm1584, %v1556, %v1621
      %1623 = vst [vmem:[%s1582 + $0x30] sm:$0xf] %v1622
      %v1624 = vld [vmem:[%s1582 + $0x34] sm:$0x1]
      %v1625 = vsel %vm1419, %v1557, %v1624
      %1626 = vst [vmem:[%s1582 + $0x34] sm:$0x1] %v1625
      %v1627 = vld [vmem:[%s1582 + $0x38] sm:$0xf]
      %v1628 = vsel %vm1584, %v1564, %v1627
      %1629 = vst [vmem:[%s1582 + $0x38] sm:$0xf] %v1628
      %v1630 = vld [vmem:[%s1582 + $0x3c] sm:$0x1]
      %v1631 = vsel %vm1419, %v1565, %v1630
      %1632 = vst [vmem:[%s1582 + $0x3c] sm:$0x1] %v1631
      %v1633 = vld [vmem:[#allocation2] sm:$0xf]
      %v1634 = vld [vmem:[#allocation2 + $0x8] sm:$0xf]
      %v1635 = vld [vmem:[#allocation2 + $0x10] sm:$0xf]
      %v1636 = vld [vmem:[#allocation2 + $0x18] sm:$0xf]
      %v1637 = vld [vmem:[#allocation2 + $0x20] sm:$0xf]
      %v1638 = vld [vmem:[#allocation2 + $0x28] sm:$0xf]
      %v1639 = vld [vmem:[#allocation2 + $0x30] sm:$0xf]
      %v1640 = vld [vmem:[#allocation2 + $0x38] sm:$0xf]
      %v1641 = vld [vmem:[#allocation2 + $0x4] sm:$0x1]
      %v1642 = vld [vmem:[#allocation2 + $0xc] sm:$0x1]
      %v1643 = vld [vmem:[#allocation2 + $0x14] sm:$0x1]
      %v1644 = vld [vmem:[#allocation2 + $0x1c] sm:$0x1]
      %v1645 = vld [vmem:[#allocation2 + $0x24] sm:$0x1]
      %v1646 = vld [vmem:[#allocation2 + $0x2c] sm:$0x1]
      %v1647 = vld [vmem:[#allocation2 + $0x34] sm:$0x1]
      %v1648 = vld [vmem:[#allocation2 + $0x3c] sm:$0x1]
      %v1649 = vld [vmem:[#allocation2] sm:$0xe]
      %v1650 = vld [vmem:[#allocation2 + $0x8] sm:$0xe]
      %v1651 = vld [vmem:[#allocation2 + $0x10] sm:$0xe]
      %v1652 = vld [vmem:[#allocation2 + $0x18] sm:$0xe]
      %v1653 = vld [vmem:[#allocation2 + $0x20] sm:$0xe]
      %v1654 = vld [vmem:[#allocation2 + $0x28] sm:$0xe]
      %v1655 = vld [vmem:[#allocation2 + $0x30] sm:$0xe]
      %v1656 = vld [vmem:[#allocation2 + $0x38] sm:$0xe]
      %v1673 = vunpack.c.l.b16 %v1633
      %v1674 = vunpack.c.l.b16 %v1641
      %v1675 = vunpack.c.l.b16 %v1634
      %v1676 = vunpack.c.l.b16 %v1642
      %v1677 = vunpack.c.l.b16 %v1635
      %v1678 = vunpack.c.l.b16 %v1643
      %v1679 = vunpack.c.l.b16 %v1636
      %v1680 = vunpack.c.l.b16 %v1644
      %v1681 = vunpack.c.l.b16 %v1637
      %v1682 = vunpack.c.l.b16 %v1645
      %v1683 = vunpack.c.l.b16 %v1638
      %v1684 = vunpack.c.l.b16 %v1646
      %v1685 = vunpack.c.l.b16 %v1639
      %v1686 = vunpack.c.l.b16 %v1647
      %v1687 = vunpack.c.l.b16 %v1640
      %v1688 = vunpack.c.l.b16 %v1648
      %v1689 = vpack.c.b16 %v1674, %v1673
      %v1690 = vpack.c.b16 %v1676, %v1675
      %v1691 = vpack.c.b16 %v1678, %v1677
      %v1692 = vpack.c.b16 %v1680, %v1679
      %v1693 = vpack.c.b16 %v1682, %v1681
      %v1694 = vpack.c.b16 %v1684, %v1683
      %v1695 = vpack.c.b16 %v1686, %v1685
      %v1696 = vpack.c.b16 %v1688, %v1687
      %v1698 = vshrl.u32 %v1689, 16
      %v1700 = vshll.u32 %v1689, 16
      %v1702 = vrot.slane %v1700, 1
      %v1703 = vor.u32 %v1698, %v1702
      %v1705 = vshrl.u32 %v1690, 16
      %v1707 = vshll.u32 %v1690, 16
      %v1709 = vrot.slane %v1707, 1
      %v1710 = vor.u32 %v1705, %v1709
      %v1712 = vshrl.u32 %v1691, 16
      %v1714 = vshll.u32 %v1691, 16
      %v1716 = vrot.slane %v1714, 1
      %v1717 = vor.u32 %v1712, %v1716
      %v1719 = vshrl.u32 %v1692, 16
      %v1721 = vshll.u32 %v1692, 16
      %v1723 = vrot.slane %v1721, 1
      %v1724 = vor.u32 %v1719, %v1723
      %v1726 = vshrl.u32 %v1693, 16
      %v1728 = vshll.u32 %v1693, 16
      %v1730 = vrot.slane %v1728, 1
      %v1731 = vor.u32 %v1726, %v1730
      %v1733 = vshrl.u32 %v1694, 16
      %v1735 = vshll.u32 %v1694, 16
      %v1737 = vrot.slane %v1735, 1
      %v1738 = vor.u32 %v1733, %v1737
      %v1740 = vshrl.u32 %v1695, 16
      %v1742 = vshll.u32 %v1695, 16
      %v1744 = vrot.slane %v1742, 1
      %v1745 = vor.u32 %v1740, %v1744
      %v1747 = vshrl.u32 %v1696, 16
      %v1749 = vshll.u32 %v1696, 16
      %v1751 = vrot.slane %v1749, 1
      %v1752 = vor.u32 %v1747, %v1751
      %1753 = vrot.lane.b32.xlu0 %v1703, 8
      %v1754 = vpop.permute.xlu0 %1753
      %1755 = vrot.lane.b32.xlu0 %v1710, 8
      %v1756 = vpop.permute.xlu0 %1755
      %1757 = vrot.lane.b32.xlu0 %v1717, 8
      %v1758 = vpop.permute.xlu0 %1757
      %1759 = vrot.lane.b32.xlu0 %v1724, 8
      %v1760 = vpop.permute.xlu0 %1759
      %1761 = vrot.lane.b32.xlu0 %v1731, 8
      %v1762 = vpop.permute.xlu0 %1761
      %1763 = vrot.lane.b32.xlu0 %v1738, 8
      %v1764 = vpop.permute.xlu0 %1763
      %1765 = vrot.lane.b32.xlu0 %v1745, 8
      %v1766 = vpop.permute.xlu0 %1765
      %1767 = vrot.lane.b32.xlu0 %v1752, 8
      %v1768 = vpop.permute.xlu0 %1767
      %v1777 = vunpack.c.l.b16 %v1649
      %v1778 = vunpack.c.l.b16 %v1650
      %v1779 = vunpack.c.l.b16 %v1651
      %v1780 = vunpack.c.l.b16 %v1652
      %v1781 = vunpack.c.l.b16 %v1653
      %v1782 = vunpack.c.l.b16 %v1654
      %v1783 = vunpack.c.l.b16 %v1655
      %v1784 = vunpack.c.l.b16 %v1656
      %v1785 = vpack.c.b16 %v1674, %v1777
      %v1786 = vpack.c.b16 %v1676, %v1778
      %v1787 = vpack.c.b16 %v1678, %v1779
      %v1788 = vpack.c.b16 %v1680, %v1780
      %v1789 = vpack.c.b16 %v1682, %v1781
      %v1790 = vpack.c.b16 %v1684, %v1782
      %v1791 = vpack.c.b16 %v1686, %v1783
      %v1792 = vpack.c.b16 %v1688, %v1784
      %v1793 = vrot.slane %v1785, 1
      %v1794 = vrot.slane %v1786, 1
      %v1795 = vrot.slane %v1787, 1
      %v1796 = vrot.slane %v1788, 1
      %v1797 = vrot.slane %v1789, 1
      %v1798 = vrot.slane %v1790, 1
      %v1799 = vrot.slane %v1791, 1
      %v1800 = vrot.slane %v1792, 1
      %1801 = vrot.lane.b32.xlu0 %v1793, 16
      %v1802 = vpop.permute.xlu0 %1801
      %1803 = vrot.lane.b32.xlu0 %v1794, 16
      %v1804 = vpop.permute.xlu0 %1803
      %1805 = vrot.lane.b32.xlu0 %v1795, 16
      %v1806 = vpop.permute.xlu0 %1805
      %1807 = vrot.lane.b32.xlu0 %v1796, 16
      %v1808 = vpop.permute.xlu0 %1807
      %1809 = vrot.lane.b32.xlu0 %v1797, 16
      %v1810 = vpop.permute.xlu0 %1809
      %1811 = vrot.lane.b32.xlu0 %v1798, 16
      %v1812 = vpop.permute.xlu0 %1811
      %1813 = vrot.lane.b32.xlu0 %v1799, 16
      %v1814 = vpop.permute.xlu0 %1813
      %1815 = vrot.lane.b32.xlu0 %v1800, 16
      %v1816 = vpop.permute.xlu0 %1815
      %v1819 = vsel %vm889, %v1633, %v1754
      %v1822 = vsel %vm889, %v1634, %v1756
      %v1825 = vsel %vm889, %v1635, %v1758
      %v1828 = vsel %vm889, %v1636, %v1760
      %v1831 = vsel %vm889, %v1637, %v1762
      %v1834 = vsel %vm889, %v1638, %v1764
      %v1837 = vsel %vm889, %v1639, %v1766
      %v1840 = vsel %vm889, %v1640, %v1768
      %vm1841 = vcmask 130048
      %v1843 = vsel %vm1841, %v1819, %v1802
      %v1845 = vsel %vm1841, %v1822, %v1804
      %v1847 = vsel %vm1841, %v1825, %v1806
      %v1849 = vsel %vm1841, %v1828, %v1808
      %v1851 = vsel %vm1841, %v1831, %v1810
      %v1853 = vsel %vm1841, %v1834, %v1812
      %v1855 = vsel %vm1841, %v1837, %v1814
      %v1857 = vsel %vm1841, %v1840, %v1816
      %v1858 = vld [vmem:[%s2] sm:$0xf]
      %v1859 = vld [vmem:[%s2 + $0x4] sm:$0xf]
      %v1860 = vld [vmem:[%s2 + $0x8] sm:$0xf]
      %v1861 = vld [vmem:[%s1582] sm:$0xf]
      %v1862 = vld [vmem:[%s1582 + $0x8] sm:$0xf]
      %v1863 = vld [vmem:[%s1582 + $0x10] sm:$0xf]
      %v1864 = vld [vmem:[%s1582 + $0x18] sm:$0xf]
      %v1865 = vld [vmem:[%s1582 + $0x20] sm:$0xf]
      %v1866 = vld [vmem:[%s1582 + $0x28] sm:$0xf]
      %v1867 = vld [vmem:[%s1582 + $0x30] sm:$0xf]
      %v1868 = vld [vmem:[%s1582 + $0x38] sm:$0xf]
      %v1869 = vld [vmem:[%s1582 + $0x4] sm:$0x1]
      %v1870 = vld [vmem:[%s1582 + $0xc] sm:$0x1]
      %v1871 = vld [vmem:[%s1582 + $0x14] sm:$0x1]
      %v1872 = vld [vmem:[%s1582 + $0x1c] sm:$0x1]
      %v1873 = vld [vmem:[%s1582 + $0x24] sm:$0x1]
      %v1874 = vld [vmem:[%s1582 + $0x2c] sm:$0x1]
      %v1875 = vld [vmem:[%s1582 + $0x34] sm:$0x1]
      %v1876 = vld [vmem:[%s1582 + $0x3c] sm:$0x1]
      %v1877 = vld [vmem:[%s1582] sm:$0xe]
      %v1878 = vld [vmem:[%s1582 + $0x8] sm:$0xe]
      %v1879 = vld [vmem:[%s1582 + $0x10] sm:$0xe]
      %v1880 = vld [vmem:[%s1582 + $0x18] sm:$0xe]
      %v1881 = vld [vmem:[%s1582 + $0x20] sm:$0xe]
      %v1882 = vld [vmem:[%s1582 + $0x28] sm:$0xe]
      %v1883 = vld [vmem:[%s1582 + $0x30] sm:$0xe]
      %v1884 = vld [vmem:[%s1582 + $0x38] sm:$0xe]
      %v1901 = vunpack.c.l.b16 %v1861
      %v1902 = vunpack.c.l.b16 %v1869
      %v1903 = vunpack.c.l.b16 %v1862
      %v1904 = vunpack.c.l.b16 %v1870
      %v1905 = vunpack.c.l.b16 %v1863
      %v1906 = vunpack.c.l.b16 %v1871
      %v1907 = vunpack.c.l.b16 %v1864
      %v1908 = vunpack.c.l.b16 %v1872
      %v1909 = vunpack.c.l.b16 %v1865
      %v1910 = vunpack.c.l.b16 %v1873
      %v1911 = vunpack.c.l.b16 %v1866
      %v1912 = vunpack.c.l.b16 %v1874
      %v1913 = vunpack.c.l.b16 %v1867
      %v1914 = vunpack.c.l.b16 %v1875
      %v1915 = vunpack.c.l.b16 %v1868
      %v1916 = vunpack.c.l.b16 %v1876
      %v1917 = vpack.c.b16 %v1902, %v1901
      %v1918 = vpack.c.b16 %v1904, %v1903
      %v1919 = vpack.c.b16 %v1906, %v1905
      %v1920 = vpack.c.b16 %v1908, %v1907
      %v1921 = vpack.c.b16 %v1910, %v1909
      %v1922 = vpack.c.b16 %v1912, %v1911
      %v1923 = vpack.c.b16 %v1914, %v1913
      %v1924 = vpack.c.b16 %v1916, %v1915
      %v1926 = vshrl.u32 %v1917, 16
      %v1928 = vshll.u32 %v1917, 16
      %v1930 = vrot.slane %v1928, 1
      %v1931 = vor.u32 %v1926, %v1930
      %v1933 = vshrl.u32 %v1918, 16
      %v1935 = vshll.u32 %v1918, 16
      %v1937 = vrot.slane %v1935, 1
      %v1938 = vor.u32 %v1933, %v1937
      %v1940 = vshrl.u32 %v1919, 16
      %v1942 = vshll.u32 %v1919, 16
      %v1944 = vrot.slane %v1942, 1
      %v1945 = vor.u32 %v1940, %v1944
      %v1947 = vshrl.u32 %v1920, 16
      %v1949 = vshll.u32 %v1920, 16
      %v1951 = vrot.slane %v1949, 1
      %v1952 = vor.u32 %v1947, %v1951
      %v1954 = vshrl.u32 %v1921, 16
      %v1956 = vshll.u32 %v1921, 16
      %v1958 = vrot.slane %v1956, 1
      %v1959 = vor.u32 %v1954, %v1958
      %v1961 = vshrl.u32 %v1922, 16
      %v1963 = vshll.u32 %v1922, 16
      %v1965 = vrot.slane %v1963, 1
      %v1966 = vor.u32 %v1961, %v1965
      %v1968 = vshrl.u32 %v1923, 16
      %v1970 = vshll.u32 %v1923, 16
      %v1972 = vrot.slane %v1970, 1
      %v1973 = vor.u32 %v1968, %v1972
      %v1975 = vshrl.u32 %v1924, 16
      %v1977 = vshll.u32 %v1924, 16
      %v1979 = vrot.slane %v1977, 1
      %v1980 = vor.u32 %v1975, %v1979
      %1981 = vrot.lane.b32.xlu0 %v1931, 8
      %v1982 = vpop.permute.xlu0 %1981
      %1983 = vrot.lane.b32.xlu0 %v1938, 8
      %v1984 = vpop.permute.xlu0 %1983
      %1985 = vrot.lane.b32.xlu0 %v1945, 8
      %v1986 = vpop.permute.xlu0 %1985
      %1987 = vrot.lane.b32.xlu0 %v1952, 8
      %v1988 = vpop.permute.xlu0 %1987
      %1989 = vrot.lane.b32.xlu0 %v1959, 8
      %v1990 = vpop.permute.xlu0 %1989
      %1991 = vrot.lane.b32.xlu0 %v1966, 8
      %v1992 = vpop.permute.xlu0 %1991
      %1993 = vrot.lane.b32.xlu0 %v1973, 8
      %v1994 = vpop.permute.xlu0 %1993
      %1995 = vrot.lane.b32.xlu0 %v1980, 8
      %v1996 = vpop.permute.xlu0 %1995
      %v2005 = vunpack.c.l.b16 %v1877
      %v2006 = vunpack.c.l.b16 %v1878
      %v2007 = vunpack.c.l.b16 %v1879
      %v2008 = vunpack.c.l.b16 %v1880
      %v2009 = vunpack.c.l.b16 %v1881
      %v2010 = vunpack.c.l.b16 %v1882
      %v2011 = vunpack.c.l.b16 %v1883
      %v2012 = vunpack.c.l.b16 %v1884
      %v2013 = vpack.c.b16 %v1902, %v2005
      %v2014 = vpack.c.b16 %v1904, %v2006
      %v2015 = vpack.c.b16 %v1906, %v2007
      %v2016 = vpack.c.b16 %v1908, %v2008
      %v2017 = vpack.c.b16 %v1910, %v2009
      %v2018 = vpack.c.b16 %v1912, %v2010
      %v2019 = vpack.c.b16 %v1914, %v2011
      %v2020 = vpack.c.b16 %v1916, %v2012
      %v2021 = vrot.slane %v2013, 1
      %v2022 = vrot.slane %v2014, 1
      %v2023 = vrot.slane %v2015, 1
      %v2024 = vrot.slane %v2016, 1
      %v2025 = vrot.slane %v2017, 1
      %v2026 = vrot.slane %v2018, 1
      %v2027 = vrot.slane %v2019, 1
      %v2028 = vrot.slane %v2020, 1
      %2029 = vrot.lane.b32.xlu0 %v2021, 16
      %v2030 = vpop.permute.xlu0 %2029
      %2031 = vrot.lane.b32.xlu0 %v2022, 16
      %v2032 = vpop.permute.xlu0 %2031
      %2033 = vrot.lane.b32.xlu0 %v2023, 16
      %v2034 = vpop.permute.xlu0 %2033
      %2035 = vrot.lane.b32.xlu0 %v2024, 16
      %v2036 = vpop.permute.xlu0 %2035
      %2037 = vrot.lane.b32.xlu0 %v2025, 16
      %v2038 = vpop.permute.xlu0 %2037
      %2039 = vrot.lane.b32.xlu0 %v2026, 16
      %v2040 = vpop.permute.xlu0 %2039
      %2041 = vrot.lane.b32.xlu0 %v2027, 16
      %v2042 = vpop.permute.xlu0 %2041
      %2043 = vrot.lane.b32.xlu0 %v2028, 16
      %v2044 = vpop.permute.xlu0 %2043
      %v2047 = vsel %vm889, %v1861, %v1982
      %v2050 = vsel %vm889, %v1862, %v1984
      %v2053 = vsel %vm889, %v1863, %v1986
      %v2056 = vsel %vm889, %v1864, %v1988
      %v2059 = vsel %vm889, %v1865, %v1990
      %v2062 = vsel %vm889, %v1866, %v1992
      %v2065 = vsel %vm889, %v1867, %v1994
      %v2068 = vsel %vm889, %v1868, %v1996
      %v2070 = vsel %vm1841, %v2047, %v2030
      %v2072 = vsel %vm1841, %v2050, %v2032
      %v2074 = vsel %vm1841, %v2053, %v2034
      %v2076 = vsel %vm1841, %v2056, %v2036
      %v2078 = vsel %vm1841, %v2059, %v2038
      %v2080 = vsel %vm1841, %v2062, %v2040
      %v2082 = vsel %vm1841, %v2065, %v2042
      %v2084 = vsel %vm1841, %v2068, %v2044
      %s2085 = scalar_lea.vmem %s2, 12
      %v2086 = vld [vmem:[%s2085] sm:$0xf]
      %v2087 = vld [vmem:[%s2085 + $0x4] sm:$0xf]
      %v2088 = vld [vmem:[%s2085 + $0x8] sm:$0xf]
      %v2097 = vunpack.c.l.b16 %v2070
      %v2098 = vunpack.c.l.b16 %v2072
      %v2099 = vunpack.c.l.b16 %v2074
      %v2100 = vunpack.c.l.b16 %v2076
      %v2101 = vunpack.c.l.b16 %v2078
      %v2102 = vunpack.c.l.b16 %v2080
      %v2103 = vunpack.c.l.b16 %v2082
      %v2104 = vunpack.c.l.b16 %v2084
      %v2105 = vpack.c.b16 %v2098, %v2097
      %v2106 = vpack.c.b16 %v2100, %v2099
      %v2107 = vpack.c.b16 %v2102, %v2101
      %v2108 = vpack.c.b16 %v2104, %v2103
      %v2112 = vunpack.c.l.b16 %v2086
      %v2113 = vunpack.c.l.b16 %v2087
      %v2114 = vunpack.c.l.b16 %v2088
      %v2115 = vpack.c.b16 %v2113, %v2112
      %v2116 = vpack.c.b16 %v2114, %v2114
      %vm2118 = vcmask 195584
      %v2120 = vsel %vm2118, %v2105, 0
      %v2123 = vsel %vm2118, %v2106, 0
      %v2126 = vsel %vm2118, %v2107, 0
      %v2129 = vsel %vm2118, %v2108, 0
      %vm2131 = vcmask 1043456
      %v2133 = vsel %vm2131, %v2116, 0
      %2135 = vmatprep.subr.bf16.mxu0 0
      %2136 = vmatpush1.bf16.msra.mxu0 %v2115
      %2137 = vmatprep.subr.bf16.mxu0 0
      %2138 = vmatpush1.bf16.msra.mxu0 %v2133
      %2139 = vmatprep.subr.bf16.mxu0 0
      %2140 = vmatpush1.bf16.msra.mxu0 0
      %2141 = vmatprep.subr.bf16.mxu0 0
      %2142 = vmatpush1.bf16.msra.mxu0 0
      %2143 = vmatprep.subr.bf16.mxu0 0
      %2144 = vmatpush1.bf16.msra.mxu0 0
      %2145 = vmatprep.subr.bf16.mxu0 0
      %2146 = vmatpush1.bf16.msra.mxu0 0
      %2147 = vmatprep.subr.bf16.mxu0 0
      %2148 = vmatpush1.bf16.msra.mxu0 0
      %2149 = vmatprep.subr.bf16.mxu0 0
      %2150 = vmatpush1.bf16.msra.mxu0 0
      %2151 = vmatprep.subr.bf16.mxu0 0
      %2152 = vmatpush1.bf16.msra.mxu0 0
      %2153 = vmatprep.subr.bf16.mxu0 0
      %2154 = vmatpush1.bf16.msra.mxu0 0
      %2155 = vmatprep.subr.bf16.mxu0 0
      %2156 = vmatpush1.bf16.msra.mxu0 0
      %2157 = vmatprep.subr.bf16.mxu0 0
      %2158 = vmatpush1.bf16.msra.mxu0 0
      %2159 = vmatprep.subr.bf16.mxu0 0
      %2160 = vmatpush1.bf16.msra.mxu0 0
      %2161 = vmatprep.subr.bf16.mxu0 0
      %2162 = vmatpush1.bf16.msra.mxu0 0
      %2163 = vmatprep.subr.bf16.mxu0 0
      %2164 = vmatpush1.bf16.msra.mxu0 0
      %2165 = vmatprep.subr.bf16.mxu0 0
      %2166 = vmatpush1.bf16.msra.mxu0 0
      %2167 = vmatprep.mubr.bf16.mxu0 0
      %2168 = vmatmul.mubr.bf16.gmra.mrb[0].mxu0 %v2120
      %v2169 = vpop.f32.mrb[0].mxu0
      %v2170 = vadd.f32 0.0, %v2169
      %v2171 = vpop.f32.mrb[0].mxu0
      %v2172 = vpop.f32.mrb[0].mxu0
      %v2173 = vadd.f32 0.0, %v2172
      %v2174 = vpop.f32.mrb[0].mxu0
      %2175 = vmatprep.mubr.bf16.mxu0 0
      %2176 = vmatmul.mubr.bf16.gmra.mrb[0].mxu0 %v2123
      %v2177 = vpop.f32.mrb[0].mxu0
      %v2178 = vadd.f32 0.0, %v2177
      %v2179 = vpop.f32.mrb[0].mxu0
      %v2180 = vpop.f32.mrb[0].mxu0
      %v2181 = vadd.f32 0.0, %v2180
      %v2182 = vpop.f32.mrb[0].mxu0
      %2183 = vmatprep.mubr.bf16.mxu0 0
      %2184 = vmatmul.mubr.bf16.gmra.mrb[0].mxu0 %v2126
      %v2185 = vpop.f32.mrb[0].mxu0
      %v2186 = vadd.f32 0.0, %v2185
      %v2187 = vpop.f32.mrb[0].mxu0
      %v2188 = vpop.f32.mrb[0].mxu0
      %v2189 = vadd.f32 0.0, %v2188
      %v2190 = vpop.f32.mrb[0].mxu0
      %2191 = vmatprep.mubr.bf16.mxu0 0
      %2192 = vmatmul.mubr.bf16.gmra.mrb[0].mxu0 %v2129
      %v2193 = vpop.f32.mrb[0].mxu0
      %v2194 = vadd.f32 0.0, %v2193
      %v2195 = vpop.f32.mrb[0].mxu0
      %v2196 = vpop.f32.mrb[0].mxu0
      %v2197 = vadd.f32 0.0, %v2196
      %v2198 = vpop.f32.mrb[0].mxu0
      %2199 = vdwg.mxu0
      %v2208 = vunpack.c.l.b16 %v1843
      %v2209 = vunpack.c.l.b16 %v1845
      %v2210 = vunpack.c.l.b16 %v1847
      %v2211 = vunpack.c.l.b16 %v1849
      %v2212 = vunpack.c.l.b16 %v1851
      %v2213 = vunpack.c.l.b16 %v1853
      %v2214 = vunpack.c.l.b16 %v1855
      %v2215 = vunpack.c.l.b16 %v1857
      %v2216 = vpack.c.b16 %v2209, %v2208
      %v2217 = vpack.c.b16 %v2211, %v2210
      %v2218 = vpack.c.b16 %v2213, %v2212
      %v2219 = vpack.c.b16 %v2215, %v2214
      %v2223 = vunpack.c.l.b16 %v1858
      %v2224 = vunpack.c.l.b16 %v1859
      %v2225 = vunpack.c.l.b16 %v1860
      %v2226 = vpack.c.b16 %v2224, %v2223
      %v2227 = vpack.c.b16 %v2225, %v2225
      %v2230 = vsel %vm2118, %v2216, 0
      %v2233 = vsel %vm2118, %v2217, 0
      %v2236 = vsel %vm2118, %v2218, 0
      %v2239 = vsel %vm2118, %v2219, 0
      %v2242 = vsel %vm2131, %v2227, 0
      %2244 = vmatprep.subr.bf16.mxu0 0
      %2245 = vmatpush1.bf16.msra.mxu0 %v2226
      %2246 = vmatprep.subr.bf16.mxu0 0
      %2247 = vmatpush1.bf16.msra.mxu0 %v2242
      %2248 = vmatprep.subr.bf16.mxu0 0
      %2249 = vmatpush1.bf16.msra.mxu0 0
      %2250 = vmatprep.subr.bf16.mxu0 0
      %2251 = vmatpush1.bf16.msra.mxu0 0
      %2252 = vmatprep.subr.bf16.mxu0 0
      %2253 = vmatpush1.bf16.msra.mxu0 0
      %2254 = vmatprep.subr.bf16.mxu0 0
      %2255 = vmatpush1.bf16.msra.mxu0 0
      %2256 = vmatprep.subr.bf16.mxu0 0
      %2257 = vmatpush1.bf16.msra.mxu0 0
      %2258 = vmatprep.subr.bf16.mxu0 0
      %2259 = vmatpush1.bf16.msra.mxu0 0
      %2260 = vmatprep.subr.bf16.mxu0 0
      %2261 = vmatpush1.bf16.msra.mxu0 0
      %2262 = vmatprep.subr.bf16.mxu0 0
      %2263 = vmatpush1.bf16.msra.mxu0 0
      %2264 = vmatprep.subr.bf16.mxu0 0
      %2265 = vmatpush1.bf16.msra.mxu0 0
      %2266 = vmatprep.subr.bf16.mxu0 0
      %2267 = vmatpush1.bf16.msra.mxu0 0
      %2268 = vmatprep.subr.bf16.mxu0 0
      %2269 = vmatpush1.bf16.msra.mxu0 0
      %2270 = vmatprep.subr.bf16.mxu0 0
      %2271 = vmatpush1.bf16.msra.mxu0 0
      %2272 = vmatprep.subr.bf16.mxu0 0
      %2273 = vmatpush1.bf16.msra.mxu0 0
      %2274 = vmatprep.subr.bf16.mxu0 0
      %2275 = vmatpush1.bf16.msra.mxu0 0
      %2276 = vmatprep.mubr.bf16.mxu0 0
      %2277 = vmatmul.mubr.bf16.gmra.mrb[0].mxu0 %v2230
      %v2278 = vpop.f32.mrb[0].mxu0
      %v2279 = vadd.f32 %v2170, %v2278
      %v2280 = vpop.f32.mrb[0].mxu0
      %v2281 = vpop.f32.mrb[0].mxu0
      %v2282 = vadd.f32 %v2173, %v2281
      %v2283 = vpop.f32.mrb[0].mxu0
      %2284 = vmatprep.mubr.bf16.mxu0 0
      %2285 = vmatmul.mubr.bf16.gmra.mrb[0].mxu0 %v2233
      %v2286 = vpop.f32.mrb[0].mxu0
      %v2287 = vadd.f32 %v2178, %v2286
      %v2288 = vpop.f32.mrb[0].mxu0
      %v2289 = vpop.f32.mrb[0].mxu0
      %v2290 = vadd.f32 %v2181, %v2289
      %v2291 = vpop.f32.mrb[0].mxu0
      %2292 = vmatprep.mubr.bf16.mxu0 0
      %2293 = vmatmul.mubr.bf16.gmra.mrb[0].mxu0 %v2236
      %v2294 = vpop.f32.mrb[0].mxu0
      %v2295 = vadd.f32 %v2186, %v2294
      %v2296 = vpop.f32.mrb[0].mxu0
      %v2297 = vpop.f32.mrb[0].mxu0
      %v2298 = vadd.f32 %v2189, %v2297
      %v2299 = vpop.f32.mrb[0].mxu0
      %2300 = vmatprep.mubr.bf16.mxu0 0
      %2301 = vmatmul.mubr.bf16.gmra.mrb[0].mxu0 %v2239
      %v2302 = vpop.f32.mrb[0].mxu0
      %v2303 = vadd.f32 %v2194, %v2302
      %v2304 = vpop.f32.mrb[0].mxu0
      %v2305 = vpop.f32.mrb[0].mxu0
      %v2306 = vadd.f32 %v2197, %v2305
      %v2307 = vpop.f32.mrb[0].mxu0
      %2308 = vdwg.mxu0
      %s2309 = scalar_lea.vmem [#allocation2], 16
      %v2310 = vld [vmem:[%s2309] sm:$0xf]
      %v2311 = vld [vmem:[%s2309 + $0x8] sm:$0xf]
      %v2312 = vld [vmem:[%s2309 + $0x10] sm:$0xf]
      %v2313 = vld [vmem:[%s2309 + $0x18] sm:$0xf]
      %v2314 = vld [vmem:[%s2309 + $0x20] sm:$0xf]
      %v2315 = vld [vmem:[%s2309 + $0x28] sm:$0xf]
      %v2316 = vld [vmem:[%s2309 + $0x30] sm:$0xf]
      %v2317 = vld [vmem:[%s2309 + $0x38] sm:$0xf]
      %v2318 = vld [vmem:[%s2309 + $0x4] sm:$0x1]
      %v2319 = vld [vmem:[%s2309 + $0xc] sm:$0x1]
      %v2320 = vld [vmem:[%s2309 + $0x14] sm:$0x1]
      %v2321 = vld [vmem:[%s2309 + $0x1c] sm:$0x1]
      %v2322 = vld [vmem:[%s2309 + $0x24] sm:$0x1]
      %v2323 = vld [vmem:[%s2309 + $0x2c] sm:$0x1]
      %v2324 = vld [vmem:[%s2309 + $0x34] sm:$0x1]
      %v2325 = vld [vmem:[%s2309 + $0x3c] sm:$0x1]
      %v2326 = vld [vmem:[%s2309] sm:$0xe]
      %v2327 = vld [vmem:[%s2309 + $0x8] sm:$0xe]
      %v2328 = vld [vmem:[%s2309 + $0x10] sm:$0xe]
      %v2329 = vld [vmem:[%s2309 + $0x18] sm:$0xe]
      %v2330 = vld [vmem:[%s2309 + $0x20] sm:$0xe]
      %v2331 = vld [vmem:[%s2309 + $0x28] sm:$0xe]
      %v2332 = vld [vmem:[%s2309 + $0x30] sm:$0xe]
      %v2333 = vld [vmem:[%s2309 + $0x38] sm:$0xe]
      %v2350 = vunpack.c.l.b16 %v2310
      %v2351 = vunpack.c.l.b16 %v2318
      %v2352 = vunpack.c.l.b16 %v2311
      %v2353 = vunpack.c.l.b16 %v2319
      %v2354 = vunpack.c.l.b16 %v2312
      %v2355 = vunpack.c.l.b16 %v2320
      %v2356 = vunpack.c.l.b16 %v2313
      %v2357 = vunpack.c.l.b16 %v2321
      %v2358 = vunpack.c.l.b16 %v2314
      %v2359 = vunpack.c.l.b16 %v2322
      %v2360 = vunpack.c.l.b16 %v2315
      %v2361 = vunpack.c.l.b16 %v2323
      %v2362 = vunpack.c.l.b16 %v2316
      %v2363 = vunpack.c.l.b16 %v2324
      %v2364 = vunpack.c.l.b16 %v2317
      %v2365 = vunpack.c.l.b16 %v2325
      %v2366 = vpack.c.b16 %v2351, %v2350
      %v2367 = vpack.c.b16 %v2353, %v2352
      %v2368 = vpack.c.b16 %v2355, %v2354
      %v2369 = vpack.c.b16 %v2357, %v2356
      %v2370 = vpack.c.b16 %v2359, %v2358
      %v2371 = vpack.c.b16 %v2361, %v2360
      %v2372 = vpack.c.b16 %v2363, %v2362
      %v2373 = vpack.c.b16 %v2365, %v2364
      %v2375 = vshrl.u32 %v2366, 16
      %v2377 = vshll.u32 %v2366, 16
      %v2379 = vrot.slane %v2377, 1
      %v2380 = vor.u32 %v2375, %v2379
      %v2382 = vshrl.u32 %v2367, 16
      %v2384 = vshll.u32 %v2367, 16
      %v2386 = vrot.slane %v2384, 1
      %v2387 = vor.u32 %v2382, %v2386
      %v2389 = vshrl.u32 %v2368, 16
      %v2391 = vshll.u32 %v2368, 16
      %v2393 = vrot.slane %v2391, 1
      %v2394 = vor.u32 %v2389, %v2393
      %v2396 = vshrl.u32 %v2369, 16
      %v2398 = vshll.u32 %v2369, 16
      %v2400 = vrot.slane %v2398, 1
      %v2401 = vor.u32 %v2396, %v2400
      %v2403 = vshrl.u32 %v2370, 16
      %v2405 = vshll.u32 %v2370, 16
      %v2407 = vrot.slane %v2405, 1
      %v2408 = vor.u32 %v2403, %v2407
      %v2410 = vshrl.u32 %v2371, 16
      %v2412 = vshll.u32 %v2371, 16
      %v2414 = vrot.slane %v2412, 1
      %v2415 = vor.u32 %v2410, %v2414
      %v2417 = vshrl.u32 %v2372, 16
      %v2419 = vshll.u32 %v2372, 16
      %v2421 = vrot.slane %v2419, 1
      %v2422 = vor.u32 %v2417, %v2421
      %v2424 = vshrl.u32 %v2373, 16
      %v2426 = vshll.u32 %v2373, 16
      %v2428 = vrot.slane %v2426, 1
      %v2429 = vor.u32 %v2424, %v2428
      %2430 = vrot.lane.b32.xlu0 %v2380, 8
      %v2431 = vpop.permute.xlu0 %2430
      %2432 = vrot.lane.b32.xlu0 %v2387, 8
      %v2433 = vpop.permute.xlu0 %2432
      %2434 = vrot.lane.b32.xlu0 %v2394, 8
      %v2435 = vpop.permute.xlu0 %2434
      %2436 = vrot.lane.b32.xlu0 %v2401, 8
      %v2437 = vpop.permute.xlu0 %2436
      %2438 = vrot.lane.b32.xlu0 %v2408, 8
      %v2439 = vpop.permute.xlu0 %2438
      %2440 = vrot.lane.b32.xlu0 %v2415, 8
      %v2441 = vpop.permute.xlu0 %2440
      %2442 = vrot.lane.b32.xlu0 %v2422, 8
      %v2443 = vpop.permute.xlu0 %2442
      %2444 = vrot.lane.b32.xlu0 %v2429, 8
      %v2445 = vpop.permute.xlu0 %2444
      %v2454 = vunpack.c.l.b16 %v2326
      %v2455 = vunpack.c.l.b16 %v2327
      %v2456 = vunpack.c.l.b16 %v2328
      %v2457 = vunpack.c.l.b16 %v2329
      %v2458 = vunpack.c.l.b16 %v2330
      %v2459 = vunpack.c.l.b16 %v2331
      %v2460 = vunpack.c.l.b16 %v2332
      %v2461 = vunpack.c.l.b16 %v2333
      %v2462 = vpack.c.b16 %v2351, %v2454
      %v2463 = vpack.c.b16 %v2353, %v2455
      %v2464 = vpack.c.b16 %v2355, %v2456
      %v2465 = vpack.c.b16 %v2357, %v2457
      %v2466 = vpack.c.b16 %v2359, %v2458
      %v2467 = vpack.c.b16 %v2361, %v2459
      %v2468 = vpack.c.b16 %v2363, %v2460
      %v2469 = vpack.c.b16 %v2365, %v2461
      %v2470 = vrot.slane %v2462, 1
      %v2471 = vrot.slane %v2463, 1
      %v2472 = vrot.slane %v2464, 1
      %v2473 = vrot.slane %v2465, 1
      %v2474 = vrot.slane %v2466, 1
      %v2475 = vrot.slane %v2467, 1
      %v2476 = vrot.slane %v2468, 1
      %v2477 = vrot.slane %v2469, 1
      %2478 = vrot.lane.b32.xlu0 %v2470, 16
      %v2479 = vpop.permute.xlu0 %2478
      %2480 = vrot.lane.b32.xlu0 %v2471, 16
      %v2481 = vpop.permute.xlu0 %2480
      %2482 = vrot.lane.b32.xlu0 %v2472, 16
      %v2483 = vpop.permute.xlu0 %2482
      %2484 = vrot.lane.b32.xlu0 %v2473, 16
      %v2485 = vpop.permute.xlu0 %2484
      %2486 = vrot.lane.b32.xlu0 %v2474, 16
      %v2487 = vpop.permute.xlu0 %2486
      %2488 = vrot.lane.b32.xlu0 %v2475, 16
      %v2489 = vpop.permute.xlu0 %2488
      %2490 = vrot.lane.b32.xlu0 %v2476, 16
      %v2491 = vpop.permute.xlu0 %2490
      %2492 = vrot.lane.b32.xlu0 %v2477, 16
      %v2493 = vpop.permute.xlu0 %2492
      %v2496 = vsel %vm889, %v2310, %v2431
      %v2499 = vsel %vm889, %v2311, %v2433
      %v2502 = vsel %vm889, %v2312, %v2435
      %v2505 = vsel %vm889, %v2313, %v2437
      %v2508 = vsel %vm889, %v2314, %v2439
      %v2511 = vsel %vm889, %v2315, %v2441
      %v2514 = vsel %vm889, %v2316, %v2443
      %v2517 = vsel %vm889, %v2317, %v2445
      %v2519 = vsel %vm1841, %v2496, %v2479
      %v2521 = vsel %vm1841, %v2499, %v2481
      %v2523 = vsel %vm1841, %v2502, %v2483
      %v2525 = vsel %vm1841, %v2505, %v2485
      %v2527 = vsel %vm1841, %v2508, %v2487
      %v2529 = vsel %vm1841, %v2511, %v2489
      %v2531 = vsel %vm1841, %v2514, %v2491
      %v2533 = vsel %vm1841, %v2517, %v2493
      %s2534 = scalar_lea.vmem %s2, 24
      %v2535 = vld [vmem:[%s2534] sm:$0xf]
      %v2536 = vld [vmem:[%s2534 + $0x4] sm:$0xf]
      %v2537 = vld [vmem:[%s2534 + $0x8] sm:$0xf]
      %v2546 = vunpack.c.l.b16 %v2519
      %v2547 = vunpack.c.l.b16 %v2521
      %v2548 = vunpack.c.l.b16 %v2523
      %v2549 = vunpack.c.l.b16 %v2525
      %v2550 = vunpack.c.l.b16 %v2527
      %v2551 = vunpack.c.l.b16 %v2529
      %v2552 = vunpack.c.l.b16 %v2531
      %v2553 = vunpack.c.l.b16 %v2533
      %v2554 = vpack.c.b16 %v2547, %v2546
      %v2555 = vpack.c.b16 %v2549, %v2548
      %v2556 = vpack.c.b16 %v2551, %v2550
      %v2557 = vpack.c.b16 %v2553, %v2552
      %v2561 = vunpack.c.l.b16 %v2535
      %v2562 = vunpack.c.l.b16 %v2536
      %v2563 = vunpack.c.l.b16 %v2537
      %v2564 = vpack.c.b16 %v2562, %v2561
      %v2565 = vpack.c.b16 %v2563, %v2563
      %v2568 = vsel %vm2118, %v2554, 0
      %v2571 = vsel %vm2118, %v2555, 0
      %v2574 = vsel %vm2118, %v2556, 0
      %v2577 = vsel %vm2118, %v2557, 0
      %v2580 = vsel %vm2131, %v2565, 0
      %2582 = vmatprep.subr.bf16.mxu0 0
      %2583 = vmatpush1.bf16.msra.mxu0 %v2564
      %2584 = vmatprep.subr.bf16.mxu0 0
      %2585 = vmatpush1.bf16.msra.mxu0 %v2580
      %2586 = vmatprep.subr.bf16.mxu0 0
      %2587 = vmatpush1.bf16.msra.mxu0 0
      %2588 = vmatprep.subr.bf16.mxu0 0
      %2589 = vmatpush1.bf16.msra.mxu0 0
      %2590 = vmatprep.subr.bf16.mxu0 0
      %2591 = vmatpush1.bf16.msra.mxu0 0
      %2592 = vmatprep.subr.bf16.mxu0 0
      %2593 = vmatpush1.bf16.msra.mxu0 0
      %2594 = vmatprep.subr.bf16.mxu0 0
      %2595 = vmatpush1.bf16.msra.mxu0 0
      %2596 = vmatprep.subr.bf16.mxu0 0
      %2597 = vmatpush1.bf16.msra.mxu0 0
      %2598 = vmatprep.subr.bf16.mxu0 0
      %2599 = vmatpush1.bf16.msra.mxu0 0
      %2600 = vmatprep.subr.bf16.mxu0 0
      %2601 = vmatpush1.bf16.msra.mxu0 0
      %2602 = vmatprep.subr.bf16.mxu0 0
      %2603 = vmatpush1.bf16.msra.mxu0 0
      %2604 = vmatprep.subr.bf16.mxu0 0
      %2605 = vmatpush1.bf16.msra.mxu0 0
      %2606 = vmatprep.subr.bf16.mxu0 0
      %2607 = vmatpush1.bf16.msra.mxu0 0
      %2608 = vmatprep.subr.bf16.mxu0 0
      %2609 = vmatpush1.bf16.msra.mxu0 0
      %2610 = vmatprep.subr.bf16.mxu0 0
      %2611 = vmatpush1.bf16.msra.mxu0 0
      %2612 = vmatprep.subr.bf16.mxu0 0
      %2613 = vmatpush1.bf16.msra.mxu0 0
      %2614 = vmatprep.mubr.bf16.mxu0 0
      %2615 = vmatmul.mubr.bf16.gmra.mrb[0].mxu0 %v2568
      %v2616 = vpop.f32.mrb[0].mxu0
      %v2617 = vadd.f32 0.0, %v2616
      %v2618 = vpop.f32.mrb[0].mxu0
      %v2619 = vpop.f32.mrb[0].mxu0
      %v2620 = vadd.f32 0.0, %v2619
      %v2621 = vpop.f32.mrb[0].mxu0
      %2622 = vmatprep.mubr.bf16.mxu0 0
      %2623 = vmatmul.mubr.bf16.gmra.mrb[0].mxu0 %v2571
      %v2624 = vpop.f32.mrb[0].mxu0
      %v2625 = vadd.f32 0.0, %v2624
      %v2626 = vpop.f32.mrb[0].mxu0
      %v2627 = vpop.f32.mrb[0].mxu0
      %v2628 = vadd.f32 0.0, %v2627
      %v2629 = vpop.f32.mrb[0].mxu0
      %2630 = vmatprep.mubr.bf16.mxu0 0
      %2631 = vmatmul.mubr.bf16.gmra.mrb[0].mxu0 %v2574
      %v2632 = vpop.f32.mrb[0].mxu0
      %v2633 = vadd.f32 0.0, %v2632
      %v2634 = vpop.f32.mrb[0].mxu0
      %v2635 = vpop.f32.mrb[0].mxu0
      %v2636 = vadd.f32 0.0, %v2635
      %v2637 = vpop.f32.mrb[0].mxu0
      %2638 = vmatprep.mubr.bf16.mxu0 0
      %2639 = vmatmul.mubr.bf16.gmra.mrb[0].mxu0 %v2577
      %v2640 = vpop.f32.mrb[0].mxu0
      %v2641 = vadd.f32 0.0, %v2640
      %v2642 = vpop.f32.mrb[0].mxu0
      %v2643 = vpop.f32.mrb[0].mxu0
      %v2644 = vadd.f32 0.0, %v2643
      %v2645 = vpop.f32.mrb[0].mxu0
      %2646 = vdwg.mxu0
      %v2647 = vadd.f32 %v2279, %v2617
      %v2648 = vadd.f32 %v2282, %v2620
      %v2649 = vadd.f32 %v2287, %v2625
      %v2650 = vadd.f32 %v2290, %v2628
      %v2651 = vadd.f32 %v2295, %v2633
      %v2652 = vadd.f32 %v2298, %v2636
      %v2653 = vadd.f32 %v2303, %v2641
      %v2654 = vadd.f32 %v2306, %v2644
      %v2655 = vld [vmem:[%s3] sm:$0x3]
      %v2656 = vunpack.c.l.b16 %v768
      %v2657 = vunpack.c.l.b16 %v769
      %v2658 = vunpack.c.l.b16 %v770
      %v2659 = vunpack.c.l.b16 %v771
      %v2660 = vunpack.c.l.b16 %v772
      %v2661 = vunpack.c.l.b16 %v773
      %v2662 = vunpack.c.l.b16 %v774
      %v2663 = vunpack.c.l.b16 %v775
      %v2664 = vpack.c.b16 %v2657, %v2656
      %v2665 = vpack.c.b16 %v2659, %v2658
      %v2666 = vpack.c.b16 %v2661, %v2660
      %v2667 = vpack.c.b16 %v2663, %v2662
      %v2669 = vsel %vm872, %v2664, 0
      %v2672 = vsel %vm872, %v2665, 0
      %v2675 = vsel %vm872, %v2666, 0
      %v2678 = vsel %vm872, %v2667, 0
      %vm2680 = vcmask 1041408
      %v2682 = vsel %vm2680, %v2655, 0
      %2684 = vmatprep.subr.bf16.mxu0 0
      %2685 = vmatpush1.bf16.msra.mxu0 %v2682
      %2686 = vmatprep.subr.bf16.mxu0 0
      %2687 = vmatpush1.bf16.msra.mxu0 0
      %2688 = vmatprep.subr.bf16.mxu0 0
      %2689 = vmatpush1.bf16.msra.mxu0 0
      %2690 = vmatprep.subr.bf16.mxu0 0
      %2691 = vmatpush1.bf16.msra.mxu0 0
      %2692 = vmatprep.subr.bf16.mxu0 0
      %2693 = vmatpush1.bf16.msra.mxu0 0
      %2694 = vmatprep.subr.bf16.mxu0 0
      %2695 = vmatpush1.bf16.msra.mxu0 0
      %2696 = vmatprep.subr.bf16.mxu0 0
      %2697 = vmatpush1.bf16.msra.mxu0 0
      %2698 = vmatprep.subr.bf16.mxu0 0
      %2699 = vmatpush1.bf16.msra.mxu0 0
      %2700 = vmatprep.subr.bf16.mxu0 0
      %2701 = vmatpush1.bf16.msra.mxu0 0
      %2702 = vmatprep.subr.bf16.mxu0 0
      %2703 = vmatpush1.bf16.msra.mxu0 0
      %2704 = vmatprep.subr.bf16.mxu0 0
      %2705 = vmatpush1.bf16.msra.mxu0 0
      %2706 = vmatprep.subr.bf16.mxu0 0
      %2707 = vmatpush1.bf16.msra.mxu0 0
      %2708 = vmatprep.subr.bf16.mxu0 0
      %2709 = vmatpush1.bf16.msra.mxu0 0
      %2710 = vmatprep.subr.bf16.mxu0 0
      %2711 = vmatpush1.bf16.msra.mxu0 0
      %2712 = vmatprep.subr.bf16.mxu0 0
      %2713 = vmatpush1.bf16.msra.mxu0 0
      %2714 = vmatprep.subr.bf16.mxu0 0
      %2715 = vmatpush1.bf16.msra.mxu0 0
      %2716 = vmatprep.mubr.bf16.mxu0 0
      %2717 = vmatmul.mubr.bf16.gmra.mrb[0].mxu0 %v2669
      %v2718 = vpop.f32.mrb[0].mxu0
      %v2719 = vadd.f32 0.0, %v2718
      %v2720 = vpop.f32.mrb[0].mxu0
      %v2721 = vpop.f32.mrb[0].mxu0
      %v2722 = vadd.f32 0.0, %v2721
      %v2723 = vpop.f32.mrb[0].mxu0
      %2724 = vmatprep.mubr.bf16.mxu0 0
      %2725 = vmatmul.mubr.bf16.gmra.mrb[0].mxu0 %v2672
      %v2726 = vpop.f32.mrb[0].mxu0
      %v2727 = vadd.f32 0.0, %v2726
      %v2728 = vpop.f32.mrb[0].mxu0
      %v2729 = vpop.f32.mrb[0].mxu0
      %v2730 = vadd.f32 0.0, %v2729
      %v2731 = vpop.f32.mrb[0].mxu0
      %2732 = vmatprep.mubr.bf16.mxu0 0
      %2733 = vmatmul.mubr.bf16.gmra.mrb[0].mxu0 %v2675
      %v2734 = vpop.f32.mrb[0].mxu0
      %v2735 = vadd.f32 0.0, %v2734
      %v2736 = vpop.f32.mrb[0].mxu0
      %v2737 = vpop.f32.mrb[0].mxu0
      %v2738 = vadd.f32 0.0, %v2737
      %v2739 = vpop.f32.mrb[0].mxu0
      %2740 = vmatprep.mubr.bf16.mxu0 0
      %2741 = vmatmul.mubr.bf16.gmra.mrb[0].mxu0 %v2678
      %v2742 = vpop.f32.mrb[0].mxu0
      %v2743 = vadd.f32 0.0, %v2742
      %v2744 = vpop.f32.mrb[0].mxu0
      %v2745 = vpop.f32.mrb[0].mxu0
      %v2746 = vadd.f32 0.0, %v2745
      %v2747 = vpop.f32.mrb[0].mxu0
      %2748 = vdwg.mxu0
      %v2749 = vadd.f32 %v2647, %v2719
      %v2750 = vadd.f32 %v2648, %v2722
      %v2751 = vadd.f32 %v2649, %v2727
      %v2752 = vadd.f32 %v2650, %v2730
      %v2753 = vadd.f32 %v2651, %v2735
      %v2754 = vadd.f32 %v2652, %v2738
      %v2755 = vadd.f32 %v2653, %v2743
      %v2756 = vadd.f32 %v2654, %v2746
      %v2757 = vld [vmem:[%s5 + $0x1] sm:$0x1]
      %v2758 = vlaneseq
      %v2759 = vshrl.u32 %v2758, 7
      %v2760 = vsub.s32 0, %v2759
      %v2761 = vrot.slane %v2757, %v2760
      %v2762 = vadd.f32 %v2749, %v2761
      %v2763 = vadd.f32 %v2750, %v2761
      %v2764 = vadd.f32 %v2751, %v2761
      %v2765 = vadd.f32 %v2752, %v2761
      %v2766 = vadd.f32 %v2753, %v2761
      %v2767 = vadd.f32 %v2754, %v2761
      %v2768 = vadd.f32 %v2755, %v2761
      %v2769 = vadd.f32 %v2756, %v2761
      %2770 = vst.msk [vmem:[%s251] sm:$0xff] %vm889, %v2762
      %2771 = vst.msk [vmem:[%s251 + $0x8] sm:$0xff] %vm889, %v2763
      %2772 = vst.msk [vmem:[%s251 + $0x10] sm:$0xff] %vm889, %v2764
      %2773 = vst.msk [vmem:[%s251 + $0x18] sm:$0xff] %vm889, %v2765
      %2774 = vst.msk [vmem:[%s251 + $0x20] sm:$0xff] %vm889, %v2766
      %2775 = vst.msk [vmem:[%s251 + $0x28] sm:$0xff] %vm889, %v2767
      %2776 = vst.msk [vmem:[%s251 + $0x30] sm:$0xff] %vm889, %v2768
      %2777 = vst.msk [vmem:[%s251 + $0x38] sm:$0xff] %vm889, %v2769
      %p2778 = scmp.lt.s32.totalorder %s17, 1
      %s2779 = scalar_select %p2778, %s17, 1
      %s2780 = smul.addr %s2779, 8
      %s2781 = smul.addr %s2780, 8
      %s2782 = scalar_lea.vmem %s6, %s2781
      // Predicated region
      $region45: #{basic_block_forward.1} parent=43 // pred_check
        %p2783 = pneg %p166
      $region46: #{basic_block_forward.1} parent=43 // pred_check_branch
        %2785 = sbr.rel (%p2783) target = $region48
      $region47: #{basic_block_forward.1} parent=43 // pred_region
        _
      $region48: #{basic_block_forward.1} parent=43 // pred_fallthru
        _
    $region44: #{basic_block_forward.1} parent=5 // pred_fallthru
      _
    %p2786 = scmp.le.s32.totalorder 2, %s12
    // Predicated region
    $region49: #{basic_block_forward.1} parent=5 // pred_check
      %p2787 = pneg %p2786
    $region50: #{basic_block_forward.1} parent=5 // pred_check_branch
      %2789 = sbr.rel (%p2787) target = $region52
    $region51: #{basic_block_forward.1} parent=5 // pred_region
      %s2790 = ssub.s32 %s12, 2
      // Predicated region
      $region53: #{basic_block_forward.1} parent=51 // pred_check
        %p2791 = pneg %p172
      $region54: #{basic_block_forward.1} parent=51 // pred_check_branch
        %2793 = sbr.rel (%p2791) target = $region56
      $region55: #{basic_block_forward.1} parent=51 // pred_region
        %p2794 = scmp.lt.s32.totalorder %s18, 1
        %s2795 = scalar_select %p2794, %s18, 1
        %s2796 = smul.addr %s2795, 8
        %s2797 = smul.addr %s2796, 8
        %s2798 = scalar_lea.vmem %s6, %s2797
      $region56: #{basic_block_forward.1} parent=51 // pred_fallthru
        _
    $region52: #{basic_block_forward.1} parent=5 // pred_fallthru
      _
  $region6: #{basic_block_forward.1} parent=0 // loop_footer
    %s16 = sadd.s32 1, %s12
  $region7: #{basic_block_forward.1} parent=0 // loop_footer_branch
    %11 = sbr.rel target = $region3
  $region8: #{basic_block_forward.1} parent=0 // loop_exit
    _

</llo_original>
